<compile_context>
chip_gen: v5e
topology: v5e:2x2
jax: 0.10.0
libtpu: 0.0.40
codegen_flags: <defaults>
</compile_context>

<pallas_src>
import functools

import numpy as np

import jax
import jax.numpy as jnp
from jax import lax
from jax.experimental import pallas as pl
from jax.experimental.pallas import tpu as pltpu


def _pick_tile(dim, candidates=(64, 32, 16, 8)):
    """Largest sublane-aligned tile dividing `dim` (falls back to full dim).

    Capped at 64 so the disp kernel's (D, tile_h, W3) live block also fits the
    smaller v7x VMEM budget at production shapes.
    """
    for t in candidates:
        if dim % t == 0:
            return t
    return dim


# ---------------------------------------------------------------------------
# 1) Feature stand-in + matching channel reduction, fused.
#    reduced[b] = sum_co w_red[b, co] * relu(sum_ci w_fea[ci, co] * sub[b, ci])
#    Pure-VPU scalar FMAs (C is tiny); weights live in SMEM.
#    TODO(synk): at real NAS widths (C~32) the pointwise contractions should
#    move onto the MXU as (Hs*Ws, C_in) @ (C_in, C_out).
# ---------------------------------------------------------------------------
def _feature_reduce_kernel(w_fea_ref, w_red_ref, x_ref, o_ref):
    b = pl.program_id(0)                               # stacked-batch index
    x = x_ref[0]                                       # (C_in, Hs, Ws)
    c_in = x.shape[0]
    c_fea = w_fea_ref.shape[1]
    acc = jnp.zeros(x.shape[1:], jnp.float32)
    for co in range(c_fea):
        f = w_fea_ref[0, co] * x[0]
        for ci in range(1, c_in):
            f = f + w_fea_ref[ci, co] * x[ci]
        acc = acc + w_red_ref[b, co] * jnp.maximum(f, 0.0)   # fused ReLU + reduce
    o_ref[0] = acc


def feature_reduce_forward(x_img, y_img, w_fea, w_mat):
    # TODO(synk): real newFeature is a NAS multi-cell network (architecture from
    # .npy); stand-in keeps the same 1/3-resolution output contract.
    n, c_in, _, _ = x_img.shape
    c_fea = w_fea.shape[1]
    imgs = jnp.concatenate([x_img, y_img], axis=0)          # (2N, C_in, H, W)
    # TODO(synk): fuse the stride-3 subsample into the kernel (strided DMA) to
    # avoid the extra HBM round-trip of the subsampled tensor.
    sub = imgs[:, :, ::3, ::3]                              # (2N, C_in, Hs, Ws)
    hs, ws = sub.shape[2], sub.shape[3]
    # Per-image reduction weights: left images use w_mat[:C], right w_mat[C:].
    w_red = jnp.concatenate([
        jnp.broadcast_to(w_mat[:c_fea, 0][None, :], (n, c_fea)),
        jnp.broadcast_to(w_mat[c_fea:, 0][None, :], (n, c_fea)),
    ], axis=0)                                              # (2N, C)
    return pl.pallas_call(
        _feature_reduce_kernel,
        out_shape=jax.ShapeDtypeStruct((2 * n, hs, ws), jnp.float32),
        grid=(2 * n,),
        in_specs=[
            pl.BlockSpec(memory_space=pltpu.MemorySpace.SMEM),     # w_fea
            pl.BlockSpec(memory_space=pltpu.MemorySpace.SMEM),     # w_red
            pl.BlockSpec((1, c_in, hs, ws), lambda b: (b, 0, 0, 0)),
        ],
        out_specs=pl.BlockSpec((1, hs, ws), lambda b: (b, 0, 0)),
        compiler_params=pltpu.CompilerParams(dimension_semantics=("parallel",)),
    )(w_fea, w_red, sub)


# ---------------------------------------------------------------------------
# 2) Cost volume + matching conv (channel reduction already hoisted):
#      mcost[n, i, h, w] = (px[n, h, w] + py[n, h, w - i]) * (w >= i)
#    All disparity levels are produced in one grid step per (batch, H-tile);
#    shifts are compile-time lane shifts (concat of slices), the mask iota is
#    hoisted out of the level loop.
# ---------------------------------------------------------------------------
def _cost_kernel(px_ref, py_ref, o_ref):
    px = px_ref[...]                                   # (1, tile_h, Ws)
    py = py_ref[...]
    d_levels = o_ref.shape[1]
    nb, th, ws = px.shape
    w_pos = lax.broadcasted_iota(jnp.int32, (nb, th, ws), 2)   # hoisted once
    for i in range(d_levels):                          # static unroll over D
        shifted = py if i == 0 else jnp.roll(py, i, axis=2)    # static lane shift
        o_ref[:, i] = jnp.where(w_pos >= i, px + shifted, 0.0)


def cost_forward(fea_red, d_levels):
    # TODO(synk): real newMatching is a NAS 3-D conv network (architecture from
    # .npy); stand-in is a 1x1x1 conv reducing 2C channels to 1 whose channel
    # reduction is hoisted into feature_reduce_forward (exact: it is linear and
    # the disparity mask factors out).
    two_n, hs, ws = fea_red.shape
    n = two_n // 2
    tile_h = _pick_tile(hs)
    return pl.pallas_call(
        _cost_kernel,
        out_shape=jax.ShapeDtypeStruct((n, d_levels, hs, ws), jnp.float32),
        grid=(n, hs // tile_h),
        in_specs=[
            pl.BlockSpec((1, tile_h, ws), lambda b, h: (b, h, 0)),      # left
            pl.BlockSpec((1, tile_h, ws), lambda b, h: (n + b, h, 0)),  # right
        ],
        out_specs=pl.BlockSpec((1, d_levels, tile_h, ws),
                               lambda b, h: (b, 0, h, 0)),
        compiler_params=pltpu.CompilerParams(
            dimension_semantics=("parallel", "parallel")),
    )(fea_red, fea_red)


# ---------------------------------------------------------------------------
# 3) Disp: trilinear 3x upsample + softmin + disparity regression, fused and
#    tiled over output rows.  H/W upsamples are matmuls against small
#    interpolation matrices (half-pixel, edge clamp == align_corners=False);
#    the D-axis 3x upsample is folded into the softmin via its exact 3-phase
#    decomposition, streamed over the low-res disparity axis.
# ---------------------------------------------------------------------------
def _disp_kernel(p_ref, uh_ref, uw_ref, o_ref):
    m = p_ref[0]                                       # (D, Hs, Ws)
    uh = uh_ref[...]                                   # (tile_h, Hs)
    uw = uw_ref[...]                                   # (Ws, W3)
    d_low, hs, ws = m.shape
    tile_h = uh.shape[0]
    w3 = uw.shape[1]

    # H upsample: batched (tile_h, Hs) @ (Hs, Ws) per disparity slice.
    uh_b = jnp.broadcast_to(uh[None], (d_low, tile_h, hs))
    t1 = jnp.einsum('dth,dhw->dtw', uh_b, m,
                    preferred_element_type=jnp.float32)        # (D, tile_h, Ws)
    # W upsample as ONE large MXU matmul: M = D * tile_h.
    t2 = jnp.dot(t1.reshape(d_low * tile_h, ws), uw,
                 preferred_element_type=jnp.float32)
    t2 = t2.reshape(d_low, tile_h, w3)                         # (D, tile_h, W3)

    # D-axis trilinear upsample (scale 3, half-pixel, edge clamp) phases:
    #   up[3k]   = t[k-1]/3 + 2 t[k]/3
    #   up[3k+1] = t[k]
    #   up[3k+2] = 2 t[k]/3 + t[k+1]/3
    # Softmin stabilizer: the phases are convex combos of adjacent D slices and
    # phase-1 is the identity, so min over the virtual maxdisp axis == min over D.
    mn = jnp.min(t2, axis=0)                                   # (tile_h, W3)

    # Streamed softmin + disparity regression over D: live set beyond t2 is
    # O(tile_h * W3); the 27x-upsampled volume is never materialized.
    num = jnp.zeros((tile_h, w3), jnp.float32)
    den = jnp.zeros((tile_h, w3), jnp.float32)
    for d in range(d_low):
        cur = t2[d]
        prv = t2[d - 1] if d > 0 else cur
        nxt = t2[d + 1] if d + 1 < d_low else cur
        u0 = (1.0 / 3.0) * prv + (2.0 / 3.0) * cur
        u2 = (2.0 / 3.0) * cur + (1.0 / 3.0) * nxt
        e0 = jnp.exp(mn - u0)
        e1 = jnp.exp(mn - cur)
        e2 = jnp.exp(mn - u2)
        base = 3.0 * d
        num = num + e0 * base + e1 * (base + 1.0) + e2 * (base + 2.0)
        den = den + (e0 + e1 + e2)
    o_ref[0] = num / den     # exact divide for parity with the PyTorch reference


def _linear_resize_matrix(n_in, n_out):
    """1-D linear-interp weights (rows=output, cols=input), half-pixel + clamp,
    matching F.interpolate(mode='trilinear', align_corners=False) per axis."""
    o = np.arange(n_out, dtype=np.float64)
    src = (o + 0.5) * (n_in / n_out) - 0.5
    lo = np.floor(src).astype(np.int64)
    frac = (src - lo).astype(np.float32)
    lo_c = np.clip(lo, 0, n_in - 1)
    hi_c = np.clip(lo + 1, 0, n_in - 1)
    mat = np.zeros((n_out, n_in), dtype=np.float32)
    mat[np.arange(n_out), lo_c] += 1.0 - frac
    mat[np.arange(n_out), hi_c] += frac
    return mat


def disp_forward(mcost, maxdisp):
    n, d_low, hs, ws = mcost.shape
    assert maxdisp == 3 * d_low
    h3, w3 = hs * 3, ws * 3
    tile_h = _pick_tile(h3)
    uh = jnp.asarray(_linear_resize_matrix(hs, h3))            # (H3, Hs)
    uw = jnp.asarray(_linear_resize_matrix(ws, w3).T)          # (Ws, W3)
    return pl.pallas_call(
        _disp_kernel,
        out_shape=jax.ShapeDtypeStruct((n, h3, w3), jnp.float32),
        grid=(n, h3 // tile_h),
        in_specs=[
            pl.BlockSpec((1, d_low, hs, ws), lambda b, h: (b, 0, 0, 0)),
            pl.BlockSpec((tile_h, hs), lambda b, h: (h, 0)),
            pl.BlockSpec((ws, w3), lambda b, h: (0, 0)),
        ],
        out_specs=pl.BlockSpec((1, tile_h, w3), lambda b, h: (b, h, 0)),
        compiler_params=pltpu.CompilerParams(
            dimension_semantics=("parallel", "parallel")),
    )(mcost, uh, uw)


# ---------------------------------------------------------------------------
# Full LEAStereo forward.
# ---------------------------------------------------------------------------
@functools.partial(jax.jit, static_argnames=("maxdisp",))
def leastereo_forward(x_img, y_img, w_fea, w_mat, *, maxdisp):
    fea_red = feature_reduce_forward(x_img, y_img, w_fea, w_mat)   # (2N, Hs, Ws)
    mcost = cost_forward(fea_red, maxdisp // 3)                    # (N, D/3, Hs, Ws)
    return disp_forward(mcost, maxdisp)                            # (N, H, W)


# ---------------------------------------------------------------------------
# Pure-jnp reference (same stand-in convs / same interpolation convention),
# used only for an in-script correctness check.
# ---------------------------------------------------------------------------
def _reference_forward(x_img, y_img, w_fea, w_mat, maxdisp):
    hp = lax.Precision.HIGHEST
    c = w_fea.shape[1]

    def fea(img):
        sub = img[:, :, ::3, ::3]
        return jnp.maximum(
            jnp.einsum('nchw,ck->nkhw', sub, w_fea, precision=hp), 0.0)

    fx, fy = fea(x_img), fea(y_img)
    px = jnp.einsum('nkhw,k->nhw', fx, w_mat[:c, 0], precision=hp)
    py = jnp.einsum('nkhw,k->nhw', fy, w_mat[c:, 0], precision=hp)

    n, hs, ws = px.shape
    d_low = maxdisp // 3
    wpos = jnp.arange(ws)
    slabs = []
    for i in range(d_low):
        shifted = jnp.pad(py, ((0, 0), (0, 0), (i, 0)))[:, :, :ws]
        slabs.append(jnp.where(wpos[None, None, :] >= i, px + shifted, 0.0))
    mcost = jnp.stack(slabs, axis=1)                           # (N, D, Hs, Ws)

    ud = jnp.asarray(_linear_resize_matrix(d_low, maxdisp))
    uh = jnp.asarray(_linear_resize_matrix(hs, hs * 3))
    uw = jnp.asarray(_linear_resize_matrix(ws, ws * 3))
    up = jnp.einsum('Dd,ndhw->nDhw', ud, mcost, precision=hp)
    up = jnp.einsum('Hh,nDhw->nDHw', uh, up, precision=hp)
    up = jnp.einsum('Ww,nDHw->nDHW', uw, up, precision=hp)
    p = jax.nn.softmax(-up, axis=1)
    disp = jnp.arange(maxdisp, dtype=jnp.float32)
    return jnp.einsum('nDhw,D->nhw', p, disp, precision=hp)


if __name__ == "__main__":
    key = jax.random.PRNGKey(0)
    k1, k2, k3, k4 = jax.random.split(key, 4)

    N, H, W = 2, 24, 24
    MAXDISP = 12                       # -> 4 low-resolution disparity levels
    C_FEA = 4

    x_img = jax.random.normal(k1, (N, 3, H, W), dtype=jnp.float32)
    y_img = jax.random.normal(k2, (N, 3, H, W), dtype=jnp.float32)
    w_fea = jax.random.normal(k3, (3, C_FEA), dtype=jnp.float32) * 0.5
    w_mat = jax.random.normal(k4, (2 * C_FEA, 1), dtype=jnp.float32) * 0.5

    out = leastereo_forward(x_img, y_img, w_fea, w_mat, maxdisp=MAXDISP)
    out = jax.block_until_ready(out)
    assert out.shape == (N, H, W), out.shape
    assert out.dtype == jnp.float32
    assert bool(jnp.all(jnp.isfinite(out)))

    ref = _reference_forward(x_img, y_img, w_fea, w_mat, MAXDISP)
    err = float(jnp.max(jnp.abs(out - ref)))
    assert err < 5e-3, f"max |kernel - reference| = {err}"
    print("KERNEL_OK")
</pallas_src>

<mosaic_0001>
module attributes {stable_mosaic.version = 11 : i64} {
  func.func @_feature_reduce_kernel(%arg0: i32, %arg1: memref<3x4xf32, #tpu.memory_space<smem>>, %arg2: memref<4x4xf32, #tpu.memory_space<smem>>, %arg3: memref<1x3x8x8xf32, #tpu.memory_space<vmem>>, %arg4: memref<1x8x8xf32, #tpu.memory_space<vmem>>) attributes {dimension_semantics = [#tpu.dimension_semantics<parallel>], iteration_bounds = array<i64: 4>, scalar_prefetch = 0 : i64, scratch_operands = 0 : i64, tpu.core_type = #tpu.core_type<tc>, window_params = [{transform_indices = @transform_0, window_bounds = array<i64: 3, 4>}, {transform_indices = @transform_1, window_bounds = array<i64: 4, 4>}, {transform_indices = @transform_2, window_bounds = array<i64: 1, 3, 8, 8>}, {transform_indices = @transform_3, window_bounds = array<i64: 1, 8, 8>}]} {
    %c0 = arith.constant 0 : index
    %c0_0 = arith.constant 0 : index
    %c0_1 = arith.constant 0 : index
    %c0_2 = arith.constant 0 : index
    %0 = vector.load %arg3[%c0, %c0_0, %c0_1, %c0_2] : memref<1x3x8x8xf32, #tpu.memory_space<vmem>>, vector<1x3x8x8xf32>
    %1 = vector.shape_cast %0 : vector<1x3x8x8xf32> to vector<3x8x8xf32>
    %cst = arith.constant 0.000000e+00 : f32
    %2 = vector.broadcast %cst : f32 to vector<8x8xf32>
    %c0_3 = arith.constant 0 : index
    %c0_4 = arith.constant 0 : index
    %3 = memref.load %arg1[%c0_3, %c0_4] : memref<3x4xf32, #tpu.memory_space<smem>>
    %4 = vector.extract_strided_slice %1 {offsets = [0, 0, 0], sizes = [1, 8, 8], strides = [1, 1, 1]} : vector<3x8x8xf32> to vector<1x8x8xf32>
    %5 = vector.shape_cast %4 : vector<1x8x8xf32> to vector<8x8xf32>
    %6 = vector.broadcast %3 : f32 to vector<8x8xf32>
    %7 = arith.mulf %6, %5 : vector<8x8xf32>
    %c1 = arith.constant 1 : index
    %c0_5 = arith.constant 0 : index
    %8 = memref.load %arg1[%c1, %c0_5] : memref<3x4xf32, #tpu.memory_space<smem>>
    %9 = vector.extract_strided_slice %1 {offsets = [1, 0, 0], sizes = [1, 8, 8], strides = [1, 1, 1]} : vector<3x8x8xf32> to vector<1x8x8xf32>
    %10 = vector.shape_cast %9 : vector<1x8x8xf32> to vector<8x8xf32>
    %11 = vector.broadcast %8 : f32 to vector<8x8xf32>
    %12 = arith.mulf %11, %10 : vector<8x8xf32>
    %13 = arith.addf %7, %12 : vector<8x8xf32>
    %c2 = arith.constant 2 : index
    %c0_6 = arith.constant 0 : index
    %14 = memref.load %arg1[%c2, %c0_6] : memref<3x4xf32, #tpu.memory_space<smem>>
    %15 = vector.extract_strided_slice %1 {offsets = [2, 0, 0], sizes = [1, 8, 8], strides = [1, 1, 1]} : vector<3x8x8xf32> to vector<1x8x8xf32>
    %16 = vector.shape_cast %15 : vector<1x8x8xf32> to vector<8x8xf32>
    %17 = vector.broadcast %14 : f32 to vector<8x8xf32>
    %18 = arith.mulf %17, %16 : vector<8x8xf32>
    %19 = arith.addf %13, %18 : vector<8x8xf32>
    %20 = arith.index_cast %arg0 : i32 to index
    %c0_7 = arith.constant 0 : index
    %21 = memref.load %arg2[%20, %c0_7] : memref<4x4xf32, #tpu.memory_space<smem>>
    %cst_8 = arith.constant 0.000000e+00 : f32
    %22 = vector.broadcast %cst_8 : f32 to vector<8x8xf32>
    %23 = arith.maximumf %19, %22 : vector<8x8xf32>
    %24 = vector.broadcast %21 : f32 to vector<8x8xf32>
    %25 = arith.mulf %24, %23 : vector<8x8xf32>
    %26 = arith.addf %2, %25 : vector<8x8xf32>
    %c0_9 = arith.constant 0 : index
    %c1_10 = arith.constant 1 : index
    %27 = memref.load %arg1[%c0_9, %c1_10] : memref<3x4xf32, #tpu.memory_space<smem>>
    %28 = vector.extract_strided_slice %1 {offsets = [0, 0, 0], sizes = [1, 8, 8], strides = [1, 1, 1]} : vector<3x8x8xf32> to vector<1x8x8xf32>
    %29 = vector.shape_cast %28 : vector<1x8x8xf32> to vector<8x8xf32>
    %30 = vector.broadcast %27 : f32 to vector<8x8xf32>
    %31 = arith.mulf %30, %29 : vector<8x8xf32>
    %c1_11 = arith.constant 1 : index
    %c1_12 = arith.constant 1 : index
    %32 = memref.load %arg1[%c1_11, %c1_12] : memref<3x4xf32, #tpu.memory_space<smem>>
    %33 = vector.extract_strided_slice %1 {offsets = [1, 0, 0], sizes = [1, 8, 8], strides = [1, 1, 1]} : vector<3x8x8xf32> to vector<1x8x8xf32>
    %34 = vector.shape_cast %33 : vector<1x8x8xf32> to vector<8x8xf32>
    %35 = vector.broadcast %32 : f32 to vector<8x8xf32>
    %36 = arith.mulf %35, %34 : vector<8x8xf32>
    %37 = arith.addf %31, %36 : vector<8x8xf32>
    %c2_13 = arith.constant 2 : index
    %c1_14 = arith.constant 1 : index
    %38 = memref.load %arg1[%c2_13, %c1_14] : memref<3x4xf32, #tpu.memory_space<smem>>
    %39 = vector.extract_strided_slice %1 {offsets = [2, 0, 0], sizes = [1, 8, 8], strides = [1, 1, 1]} : vector<3x8x8xf32> to vector<1x8x8xf32>
    %40 = vector.shape_cast %39 : vector<1x8x8xf32> to vector<8x8xf32>
    %41 = vector.broadcast %38 : f32 to vector<8x8xf32>
    %42 = arith.mulf %41, %40 : vector<8x8xf32>
    %43 = arith.addf %37, %42 : vector<8x8xf32>
    %44 = arith.index_cast %arg0 : i32 to index
    %c1_15 = arith.constant 1 : index
    %45 = memref.load %arg2[%44, %c1_15] : memref<4x4xf32, #tpu.memory_space<smem>>
    %cst_16 = arith.constant 0.000000e+00 : f32
    %46 = vector.broadcast %cst_16 : f32 to vector<8x8xf32>
    %47 = arith.maximumf %43, %46 : vector<8x8xf32>
    %48 = vector.broadcast %45 : f32 to vector<8x8xf32>
    %49 = arith.mulf %48, %47 : vector<8x8xf32>
    %50 = arith.addf %26, %49 : vector<8x8xf32>
    %c0_17 = arith.constant 0 : index
    %c2_18 = arith.constant 2 : index
    %51 = memref.load %arg1[%c0_17, %c2_18] : memref<3x4xf32, #tpu.memory_space<smem>>
    %52 = vector.extract_strided_slice %1 {offsets = [0, 0, 0], sizes = [1, 8, 8], strides = [1, 1, 1]} : vector<3x8x8xf32> to vector<1x8x8xf32>
    %53 = vector.shape_cast %52 : vector<1x8x8xf32> to vector<8x8xf32>
    %54 = vector.broadcast %51 : f32 to vector<8x8xf32>
    %55 = arith.mulf %54, %53 : vector<8x8xf32>
    %c1_19 = arith.constant 1 : index
    %c2_20 = arith.constant 2 : index
    %56 = memref.load %arg1[%c1_19, %c2_20] : memref<3x4xf32, #tpu.memory_space<smem>>
    %57 = vector.extract_strided_slice %1 {offsets = [1, 0, 0], sizes = [1, 8, 8], strides = [1, 1, 1]} : vector<3x8x8xf32> to vector<1x8x8xf32>
    %58 = vector.shape_cast %57 : vector<1x8x8xf32> to vector<8x8xf32>
    %59 = vector.broadcast %56 : f32 to vector<8x8xf32>
    %60 = arith.mulf %59, %58 : vector<8x8xf32>
    %61 = arith.addf %55, %60 : vector<8x8xf32>
    %c2_21 = arith.constant 2 : index
    %c2_22 = arith.constant 2 : index
    %62 = memref.load %arg1[%c2_21, %c2_22] : memref<3x4xf32, #tpu.memory_space<smem>>
    %63 = vector.extract_strided_slice %1 {offsets = [2, 0, 0], sizes = [1, 8, 8], strides = [1, 1, 1]} : vector<3x8x8xf32> to vector<1x8x8xf32>
    %64 = vector.shape_cast %63 : vector<1x8x8xf32> to vector<8x8xf32>
    %65 = vector.broadcast %62 : f32 to vector<8x8xf32>
    %66 = arith.mulf %65, %64 : vector<8x8xf32>
    %67 = arith.addf %61, %66 : vector<8x8xf32>
    %68 = arith.index_cast %arg0 : i32 to index
    %c2_23 = arith.constant 2 : index
    %69 = memref.load %arg2[%68, %c2_23] : memref<4x4xf32, #tpu.memory_space<smem>>
    %cst_24 = arith.constant 0.000000e+00 : f32
    %70 = vector.broadcast %cst_24 : f32 to vector<8x8xf32>
    %71 = arith.maximumf %67, %70 : vector<8x8xf32>
    %72 = vector.broadcast %69 : f32 to vector<8x8xf32>
    %73 = arith.mulf %72, %71 : vector<8x8xf32>
    %74 = arith.addf %50, %73 : vector<8x8xf32>
    %c0_25 = arith.constant 0 : index
    %c3 = arith.constant 3 : index
    %75 = memref.load %arg1[%c0_25, %c3] : memref<3x4xf32, #tpu.memory_space<smem>>
    %76 = vector.extract_strided_slice %1 {offsets = [0, 0, 0], sizes = [1, 8, 8], strides = [1, 1, 1]} : vector<3x8x8xf32> to vector<1x8x8xf32>
    %77 = vector.shape_cast %76 : vector<1x8x8xf32> to vector<8x8xf32>
    %78 = vector.broadcast %75 : f32 to vector<8x8xf32>
    %79 = arith.mulf %78, %77 : vector<8x8xf32>
    %c1_26 = arith.constant 1 : index
    %c3_27 = arith.constant 3 : index
    %80 = memref.load %arg1[%c1_26, %c3_27] : memref<3x4xf32, #tpu.memory_space<smem>>
    %81 = vector.extract_strided_slice %1 {offsets = [1, 0, 0], sizes = [1, 8, 8], strides = [1, 1, 1]} : vector<3x8x8xf32> to vector<1x8x8xf32>
    %82 = vector.shape_cast %81 : vector<1x8x8xf32> to vector<8x8xf32>
    %83 = vector.broadcast %80 : f32 to vector<8x8xf32>
    %84 = arith.mulf %83, %82 : vector<8x8xf32>
    %85 = arith.addf %79, %84 : vector<8x8xf32>
    %c2_28 = arith.constant 2 : index
    %c3_29 = arith.constant 3 : index
    %86 = memref.load %arg1[%c2_28, %c3_29] : memref<3x4xf32, #tpu.memory_space<smem>>
    %87 = vector.extract_strided_slice %1 {offsets = [2, 0, 0], sizes = [1, 8, 8], strides = [1, 1, 1]} : vector<3x8x8xf32> to vector<1x8x8xf32>
    %88 = vector.shape_cast %87 : vector<1x8x8xf32> to vector<8x8xf32>
    %89 = vector.broadcast %86 : f32 to vector<8x8xf32>
    %90 = arith.mulf %89, %88 : vector<8x8xf32>
    %91 = arith.addf %85, %90 : vector<8x8xf32>
    %92 = arith.index_cast %arg0 : i32 to index
    %c3_30 = arith.constant 3 : index
    %93 = memref.load %arg2[%92, %c3_30] : memref<4x4xf32, #tpu.memory_space<smem>>
    %cst_31 = arith.constant 0.000000e+00 : f32
    %94 = vector.broadcast %cst_31 : f32 to vector<8x8xf32>
    %95 = arith.maximumf %91, %94 : vector<8x8xf32>
    %96 = vector.broadcast %93 : f32 to vector<8x8xf32>
    %97 = arith.mulf %96, %95 : vector<8x8xf32>
    %98 = arith.addf %74, %97 : vector<8x8xf32>
    %c0_32 = arith.constant 0 : index
    %c0_33 = arith.constant 0 : index
    %c0_34 = arith.constant 0 : index
    %99 = vector.load %arg4[%c0_32, %c0_33, %c0_34] : memref<1x8x8xf32, #tpu.memory_space<vmem>>, vector<1x8x8xf32>
    %100 = vector.shape_cast %99 : vector<1x8x8xf32> to vector<8x8xf32>
    %101 = vector.shape_cast %98 : vector<8x8xf32> to vector<1x8x8xf32>
    tpu.vector_store %arg4[%c0_32, %c0_33, %c0_34], %101 {strides = array<i32>} : memref<1x8x8xf32, #tpu.memory_space<vmem>>, vector<1x8x8xf32>,
    return
  }
  func.func @transform_0(%arg0: i32) -> (i32, i32) {
    %c0_i32 = arith.constant 0 : i32
    %c0_i32_0 = arith.constant 0 : i32
    %c0_i32_1 = arith.constant 0 : i32
    return %c0_i32, %c0_i32_0 : i32, i32
  }
  func.func @transform_1(%arg0: i32) -> (i32, i32) {
    %c0_i32 = arith.constant 0 : i32
    %c0_i32_0 = arith.constant 0 : i32
    %c0_i32_1 = arith.constant 0 : i32
    return %c0_i32, %c0_i32_0 : i32, i32
  }
  func.func @transform_2(%arg0: i32) -> (i32, i32, i32, i32) {
    %c0_i32 = arith.constant 0 : i32
    %c0_i32_0 = arith.constant 0 : i32
    %c0_i32_1 = arith.constant 0 : i32
    %c0_i32_2 = arith.constant 0 : i32
    return %arg0, %c0_i32, %c0_i32_0, %c0_i32_1 : i32, i32, i32, i32
  }
  func.func @transform_3(%arg0: i32) -> (i32, i32, i32) {
    %c0_i32 = arith.constant 0 : i32
    %c0_i32_0 = arith.constant 0 : i32
    %c0_i32_1 = arith.constant 0 : i32
    return %arg0, %c0_i32, %c0_i32_0 : i32, i32, i32
  }
}

module attributes {stable_mosaic.version = 11 : i64} {
  func.func @_cost_kernel(%arg0: i32, %arg1: i32, %arg2: memref<1x8x8xf32, #tpu.memory_space<vmem>>, %arg3: memref<1x8x8xf32, #tpu.memory_space<vmem>>, %arg4: memref<1x4x8x8xf32, #tpu.memory_space<vmem>>) attributes {dimension_semantics = [#tpu.dimension_semantics<parallel>, #tpu.dimension_semantics<parallel>], iteration_bounds = array<i64: 2, 1>, scalar_prefetch = 0 : i64, scratch_operands = 0 : i64, tpu.core_type = #tpu.core_type<tc>, window_params = [{transform_indices = @transform_0, window_bounds = array<i64: 1, 8, 8>}, {transform_indices = @transform_1, window_bounds = array<i64: 1, 8, 8>}, {transform_indices = @transform_2, window_bounds = array<i64: 1, 4, 8, 8>}]} {
    %c0 = arith.constant 0 : index
    %c0_0 = arith.constant 0 : index
    %c0_1 = arith.constant 0 : index
    %0 = vector.load %arg2[%c0, %c0_0, %c0_1] : memref<1x8x8xf32, #tpu.memory_space<vmem>>, vector<1x8x8xf32>
    %c0_2 = arith.constant 0 : index
    %c0_3 = arith.constant 0 : index
    %c0_4 = arith.constant 0 : index
    %1 = vector.load %arg3[%c0_2, %c0_3, %c0_4] : memref<1x8x8xf32, #tpu.memory_space<vmem>>, vector<1x8x8xf32>
    %2 = tpu.iota {dimensions = array<i32: 2>} : vector<1x8x8xi32>
    %c0_i32 = arith.constant 0 : i32
    %3 = vector.broadcast %c0_i32 : i32 to vector<1x8x8xi32>
    %4 = arith.cmpi sge, %2, %3 : vector<1x8x8xi32>
    %5 = arith.addf %0, %1 : vector<1x8x8xf32>
    %cst = arith.constant 0.000000e+00 : f32
    %6 = vector.broadcast %cst : f32 to vector<1x8x8xf32>
    %7 = arith.select %4, %5, %6 : vector<1x8x8xi1>, vector<1x8x8xf32>
    %c0_5 = arith.constant 0 : index
    %c0_6 = arith.constant 0 : index
    %c0_7 = arith.constant 0 : index
    %c0_8 = arith.constant 0 : index
    %8 = vector.load %arg4[%c0_5, %c0_6, %c0_7, %c0_8] : memref<1x4x8x8xf32, #tpu.memory_space<vmem>>, vector<1x1x8x8xf32>
    %9 = vector.shape_cast %8 : vector<1x1x8x8xf32> to vector<1x8x8xf32>
    %10 = vector.shape_cast %7 : vector<1x8x8xf32> to vector<1x1x8x8xf32>
    tpu.vector_store %arg4[%c0_5, %c0_6, %c0_7, %c0_8], %10 {strides = array<i32>} : memref<1x4x8x8xf32, #tpu.memory_space<vmem>>, vector<1x1x8x8xf32>,
    %11 = vector.extract_strided_slice %1 {offsets = [0, 0, 7], sizes = [1, 8, 1], strides = [1, 1, 1]} : vector<1x8x8xf32> to vector<1x8x1xf32>
    %12 = vector.extract_strided_slice %1 {offsets = [0, 0, 0], sizes = [1, 8, 7], strides = [1, 1, 1]} : vector<1x8x8xf32> to vector<1x8x7xf32>
    %13 = tpu.concatenate %11, %12 in 2 : vector<1x8x1xf32>, vector<1x8x7xf32> -> vector<1x8x8xf32>
    %c1_i32 = arith.constant 1 : i32
    %14 = vector.broadcast %c1_i32 : i32 to vector<1x8x8xi32>
    %15 = arith.cmpi sge, %2, %14 : vector<1x8x8xi32>
    %16 = arith.addf %0, %13 : vector<1x8x8xf32>
    %cst_9 = arith.constant 0.000000e+00 : f32
    %17 = vector.broadcast %cst_9 : f32 to vector<1x8x8xf32>
    %18 = arith.select %15, %16, %17 : vector<1x8x8xi1>, vector<1x8x8xf32>
    %c0_10 = arith.constant 0 : index
    %c1 = arith.constant 1 : index
    %c0_11 = arith.constant 0 : index
    %c0_12 = arith.constant 0 : index
    %19 = vector.load %arg4[%c0_10, %c1, %c0_11, %c0_12] : memref<1x4x8x8xf32, #tpu.memory_space<vmem>>, vector<1x1x8x8xf32>
    %20 = vector.shape_cast %19 : vector<1x1x8x8xf32> to vector<1x8x8xf32>
    %21 = vector.shape_cast %18 : vector<1x8x8xf32> to vector<1x1x8x8xf32>
    tpu.vector_store %arg4[%c0_10, %c1, %c0_11, %c0_12], %21 {strides = array<i32>} : memref<1x4x8x8xf32, #tpu.memory_space<vmem>>, vector<1x1x8x8xf32>,
    %22 = vector.extract_strided_slice %1 {offsets = [0, 0, 6], sizes = [1, 8, 2], strides = [1, 1, 1]} : vector<1x8x8xf32> to vector<1x8x2xf32>
    %23 = vector.extract_strided_slice %1 {offsets = [0, 0, 0], sizes = [1, 8, 6], strides = [1, 1, 1]} : vector<1x8x8xf32> to vector<1x8x6xf32>
    %24 = tpu.concatenate %22, %23 in 2 : vector<1x8x2xf32>, vector<1x8x6xf32> -> vector<1x8x8xf32>
    %c2_i32 = arith.constant 2 : i32
    %25 = vector.broadcast %c2_i32 : i32 to vector<1x8x8xi32>
    %26 = arith.cmpi sge, %2, %25 : vector<1x8x8xi32>
    %27 = arith.addf %0, %24 : vector<1x8x8xf32>
    %cst_13 = arith.constant 0.000000e+00 : f32
    %28 = vector.broadcast %cst_13 : f32 to vector<1x8x8xf32>
    %29 = arith.select %26, %27, %28 : vector<1x8x8xi1>, vector<1x8x8xf32>
    %c0_14 = arith.constant 0 : index
    %c2 = arith.constant 2 : index
    %c0_15 = arith.constant 0 : index
    %c0_16 = arith.constant 0 : index
    %30 = vector.load %arg4[%c0_14, %c2, %c0_15, %c0_16] : memref<1x4x8x8xf32, #tpu.memory_space<vmem>>, vector<1x1x8x8xf32>
    %31 = vector.shape_cast %30 : vector<1x1x8x8xf32> to vector<1x8x8xf32>
    %32 = vector.shape_cast %29 : vector<1x8x8xf32> to vector<1x1x8x8xf32>
    tpu.vector_store %arg4[%c0_14, %c2, %c0_15, %c0_16], %32 {strides = array<i32>} : memref<1x4x8x8xf32, #tpu.memory_space<vmem>>, vector<1x1x8x8xf32>,
    %33 = vector.extract_strided_slice %1 {offsets = [0, 0, 5], sizes = [1, 8, 3], strides = [1, 1, 1]} : vector<1x8x8xf32> to vector<1x8x3xf32>
    %34 = vector.extract_strided_slice %1 {offsets = [0, 0, 0], sizes = [1, 8, 5], strides = [1, 1, 1]} : vector<1x8x8xf32> to vector<1x8x5xf32>
    %35 = tpu.concatenate %33, %34 in 2 : vector<1x8x3xf32>, vector<1x8x5xf32> -> vector<1x8x8xf32>
    %c3_i32 = arith.constant 3 : i32
    %36 = vector.broadcast %c3_i32 : i32 to vector<1x8x8xi32>
    %37 = arith.cmpi sge, %2, %36 : vector<1x8x8xi32>
    %38 = arith.addf %0, %35 : vector<1x8x8xf32>
    %cst_17 = arith.constant 0.000000e+00 : f32
    %39 = vector.broadcast %cst_17 : f32 to vector<1x8x8xf32>
    %40 = arith.select %37, %38, %39 : vector<1x8x8xi1>, vector<1x8x8xf32>
    %c0_18 = arith.constant 0 : index
    %c3 = arith.constant 3 : index
    %c0_19 = arith.constant 0 : index
    %c0_20 = arith.constant 0 : index
    %41 = vector.load %arg4[%c0_18, %c3, %c0_19, %c0_20] : memref<1x4x8x8xf32, #tpu.memory_space<vmem>>, vector<1x1x8x8xf32>
    %42 = vector.shape_cast %41 : vector<1x1x8x8xf32> to vector<1x8x8xf32>
    %43 = vector.shape_cast %40 : vector<1x8x8xf32> to vector<1x1x8x8xf32>
    tpu.vector_store %arg4[%c0_18, %c3, %c0_19, %c0_20], %43 {strides = array<i32>} : memref<1x4x8x8xf32, #tpu.memory_space<vmem>>, vector<1x1x8x8xf32>,
    return
  }
  func.func @transform_0(%arg0: i32, %arg1: i32) -> (i32, i32, i32) {
    %c0_i32 = arith.constant 0 : i32
    %c0_i32_0 = arith.constant 0 : i32
    return %arg0, %arg1, %c0_i32 : i32, i32, i32
  }
  func.func @transform_1(%arg0: i32, %arg1: i32) -> (i32, i32, i32) {
    %c2_i32 = arith.constant 2 : i32
    %0 = arith.addi %c2_i32, %arg0 : i32
    %c0_i32 = arith.constant 0 : i32
    %c0_i32_0 = arith.constant 0 : i32
    return %0, %arg1, %c0_i32 : i32, i32, i32
  }
  func.func @transform_2(%arg0: i32, %arg1: i32) -> (i32, i32, i32, i32) {
    %c0_i32 = arith.constant 0 : i32
    %c0_i32_0 = arith.constant 0 : i32
    %c0_i32_1 = arith.constant 0 : i32
    return %arg0, %c0_i32, %arg1, %c0_i32_0 : i32, i32, i32, i32
  }
}

module attributes {stable_mosaic.version = 11 : i64} {
  func.func @_disp_kernel(%arg0: i32, %arg1: i32, %arg2: memref<1x4x8x8xf32, #tpu.memory_space<vmem>>, %arg3: memref<8x8xf32, #tpu.memory_space<vmem>>, %arg4: memref<8x24xf32, #tpu.memory_space<vmem>>, %arg5: memref<1x8x24xf32, #tpu.memory_space<vmem>>) attributes {dimension_semantics = [#tpu.dimension_semantics<parallel>, #tpu.dimension_semantics<parallel>], iteration_bounds = array<i64: 2, 3>, scalar_prefetch = 0 : i64, scratch_operands = 0 : i64, tpu.core_type = #tpu.core_type<tc>, window_params = [{transform_indices = @transform_0, window_bounds = array<i64: 1, 4, 8, 8>}, {transform_indices = @transform_1, window_bounds = array<i64: 8, 8>}, {pipeline_mode = #tpu.pipeline_mode<synchronous>, transform_indices = @transform_2, window_bounds = array<i64: 8, 24>}, {transform_indices = @transform_3, window_bounds = array<i64: 1, 8, 24>}]} {
    %c0 = arith.constant 0 : index
    %c0_0 = arith.constant 0 : index
    %c0_1 = arith.constant 0 : index
    %c0_2 = arith.constant 0 : index
    %0 = vector.load %arg2[%c0, %c0_0, %c0_1, %c0_2] : memref<1x4x8x8xf32, #tpu.memory_space<vmem>>, vector<1x4x8x8xf32>
    %1 = vector.shape_cast %0 : vector<1x4x8x8xf32> to vector<4x8x8xf32>
    %c0_3 = arith.constant 0 : index
    %c0_4 = arith.constant 0 : index
    %2 = vector.load %arg3[%c0_3, %c0_4] : memref<8x8xf32, #tpu.memory_space<vmem>>, vector<8x8xf32>
    %c0_5 = arith.constant 0 : index
    %c0_6 = arith.constant 0 : index
    %3 = vector.load %arg4[%c0_5, %c0_6] : memref<8x24xf32, #tpu.memory_space<vmem>>, vector<8x24xf32>
    %4 = vector.shape_cast %2 : vector<8x8xf32> to vector<1x8x8xf32>
    %5 = vector.shape_cast %4 : vector<1x8x8xf32> to vector<1x8x8xf32>
    %6 = vector.broadcast %5 : vector<1x8x8xf32> to vector<4x8x8xf32>
    "tpu.trace_start"() <{level = 10 : i32, message = "dth,dhw->dtw"}> : () -> ()
    %cst = arith.constant dense<0.000000e+00> : vector<4x8x8xf32>
    %7 = tpu.matmul %6, %1, %cst {dimension_numbers = #tpu.dot_dimension_numbers<[2], [1], [1], [2], [0, 0, 0, 1, 1, 2], [0], [0]>} : vector<4x8x8xf32>, vector<4x8x8xf32>, vector<4x8x8xf32> -> vector<4x8x8xf32>
    "tpu.trace_stop"() : () -> ()
    %8 = vector.shape_cast %7 : vector<4x8x8xf32> to vector<32x8xf32>
    %cst_7 = arith.constant dense<0.000000e+00> : vector<32x24xf32>
    %9 = tpu.matmul %8, %3, %cst_7 {dimension_numbers = #tpu.dot_dimension_numbers<[1], [0], [0], [1], [0, 0, 1, 1], [], []>} : vector<32x8xf32>, vector<8x24xf32>, vector<32x24xf32> -> vector<32x24xf32>
    %10 = vector.shape_cast %9 : vector<32x24xf32> to vector<4x8x24xf32>
    %cst_8 = arith.constant dense<0x7F800000> : vector<8x24xf32>
    %11 = vector.multi_reduction <minimumf>, %10, %cst_8 [0] : vector<4x8x24xf32> to vector<8x24xf32>
    %cst_9 = arith.constant 0.000000e+00 : f32
    %12 = vector.broadcast %cst_9 : f32 to vector<8x24xf32>
    %cst_10 = arith.constant 0.000000e+00 : f32
    %13 = vector.broadcast %cst_10 : f32 to vector<8x24xf32>
    %14 = vector.extract_strided_slice %10 {offsets = [0, 0, 0], sizes = [1, 8, 24], strides = [1, 1, 1]} : vector<4x8x24xf32> to vector<1x8x24xf32>
    %15 = vector.shape_cast %14 : vector<1x8x24xf32> to vector<8x24xf32>
    %16 = vector.extract_strided_slice %10 {offsets = [1, 0, 0], sizes = [1, 8, 24], strides = [1, 1, 1]} : vector<4x8x24xf32> to vector<1x8x24xf32>
    %17 = vector.shape_cast %16 : vector<1x8x24xf32> to vector<8x24xf32>
    %cst_11 = arith.constant 0.333333343 : f32
    %18 = vector.broadcast %cst_11 : f32 to vector<8x24xf32>
    %19 = arith.mulf %18, %15 : vector<8x24xf32>
    %cst_12 = arith.constant 0.666666686 : f32
    %20 = vector.broadcast %cst_12 : f32 to vector<8x24xf32>
    %21 = arith.mulf %20, %15 : vector<8x24xf32>
    %22 = arith.addf %19, %21 : vector<8x24xf32>
    %cst_13 = arith.constant 0.666666686 : f32
    %23 = vector.broadcast %cst_13 : f32 to vector<8x24xf32>
    %24 = arith.mulf %23, %15 : vector<8x24xf32>
    %cst_14 = arith.constant 0.333333343 : f32
    %25 = vector.broadcast %cst_14 : f32 to vector<8x24xf32>
    %26 = arith.mulf %25, %17 : vector<8x24xf32>
    %27 = arith.addf %24, %26 : vector<8x24xf32>
    %28 = arith.subf %11, %22 : vector<8x24xf32>
    %29 = math.exp %28 : vector<8x24xf32>
    %30 = arith.subf %11, %15 : vector<8x24xf32>
    %31 = math.exp %30 : vector<8x24xf32>
    %32 = arith.subf %11, %27 : vector<8x24xf32>
    %33 = math.exp %32 : vector<8x24xf32>
    %cst_15 = arith.constant 0.000000e+00 : f32
    %34 = vector.broadcast %cst_15 : f32 to vector<8x24xf32>
    %35 = arith.mulf %29, %34 : vector<8x24xf32>
    %36 = arith.addf %12, %35 : vector<8x24xf32>
    %cst_16 = arith.constant 1.000000e+00 : f32
    %37 = vector.broadcast %cst_16 : f32 to vector<8x24xf32>
    %38 = arith.mulf %31, %37 : vector<8x24xf32>
    %39 = arith.addf %36, %38 : vector<8x24xf32>
    %cst_17 = arith.constant 2.000000e+00 : f32
    %40 = vector.broadcast %cst_17 : f32 to vector<8x24xf32>
    %41 = arith.mulf %33, %40 : vector<8x24xf32>
    %42 = arith.addf %39, %41 : vector<8x24xf32>
    %43 = arith.addf %29, %31 : vector<8x24xf32>
    %44 = arith.addf %43, %33 : vector<8x24xf32>
    %45 = arith.addf %13, %44 : vector<8x24xf32>
    %46 = vector.extract_strided_slice %10 {offsets = [1, 0, 0], sizes = [1, 8, 24], strides = [1, 1, 1]} : vector<4x8x24xf32> to vector<1x8x24xf32>
    %47 = vector.shape_cast %46 : vector<1x8x24xf32> to vector<8x24xf32>
    %48 = vector.extract_strided_slice %10 {offsets = [0, 0, 0], sizes = [1, 8, 24], strides = [1, 1, 1]} : vector<4x8x24xf32> to vector<1x8x24xf32>
    %49 = vector.shape_cast %48 : vector<1x8x24xf32> to vector<8x24xf32>
    %50 = vector.extract_strided_slice %10 {offsets = [2, 0, 0], sizes = [1, 8, 24], strides = [1, 1, 1]} : vector<4x8x24xf32> to vector<1x8x24xf32>
    %51 = vector.shape_cast %50 : vector<1x8x24xf32> to vector<8x24xf32>
    %cst_18 = arith.constant 0.333333343 : f32
    %52 = vector.broadcast %cst_18 : f32 to vector<8x24xf32>
    %53 = arith.mulf %52, %49 : vector<8x24xf32>
    %cst_19 = arith.constant 0.666666686 : f32
    %54 = vector.broadcast %cst_19 : f32 to vector<8x24xf32>
    %55 = arith.mulf %54, %47 : vector<8x24xf32>
    %56 = arith.addf %53, %55 : vector<8x24xf32>
    %cst_20 = arith.constant 0.666666686 : f32
    %57 = vector.broadcast %cst_20 : f32 to vector<8x24xf32>
    %58 = arith.mulf %57, %47 : vector<8x24xf32>
    %cst_21 = arith.constant 0.333333343 : f32
    %59 = vector.broadcast %cst_21 : f32 to vector<8x24xf32>
    %60 = arith.mulf %59, %51 : vector<8x24xf32>
    %61 = arith.addf %58, %60 : vector<8x24xf32>
    %62 = arith.subf %11, %56 : vector<8x24xf32>
    %63 = math.exp %62 : vector<8x24xf32>
    %64 = arith.subf %11, %47 : vector<8x24xf32>
    %65 = math.exp %64 : vector<8x24xf32>
    %66 = arith.subf %11, %61 : vector<8x24xf32>
    %67 = math.exp %66 : vector<8x24xf32>
    %cst_22 = arith.constant 3.000000e+00 : f32
    %68 = vector.broadcast %cst_22 : f32 to vector<8x24xf32>
    %69 = arith.mulf %63, %68 : vector<8x24xf32>
    %70 = arith.addf %42, %69 : vector<8x24xf32>
    %cst_23 = arith.constant 4.000000e+00 : f32
    %71 = vector.broadcast %cst_23 : f32 to vector<8x24xf32>
    %72 = arith.mulf %65, %71 : vector<8x24xf32>
    %73 = arith.addf %70, %72 : vector<8x24xf32>
    %cst_24 = arith.constant 5.000000e+00 : f32
    %74 = vector.broadcast %cst_24 : f32 to vector<8x24xf32>
    %75 = arith.mulf %67, %74 : vector<8x24xf32>
    %76 = arith.addf %73, %75 : vector<8x24xf32>
    %77 = arith.addf %63, %65 : vector<8x24xf32>
    %78 = arith.addf %77, %67 : vector<8x24xf32>
    %79 = arith.addf %45, %78 : vector<8x24xf32>
    %80 = vector.extract_strided_slice %10 {offsets = [2, 0, 0], sizes = [1, 8, 24], strides = [1, 1, 1]} : vector<4x8x24xf32> to vector<1x8x24xf32>
    %81 = vector.shape_cast %80 : vector<1x8x24xf32> to vector<8x24xf32>
    %82 = vector.extract_strided_slice %10 {offsets = [1, 0, 0], sizes = [1, 8, 24], strides = [1, 1, 1]} : vector<4x8x24xf32> to vector<1x8x24xf32>
    %83 = vector.shape_cast %82 : vector<1x8x24xf32> to vector<8x24xf32>
    %84 = vector.extract_strided_slice %10 {offsets = [3, 0, 0], sizes = [1, 8, 24], strides = [1, 1, 1]} : vector<4x8x24xf32> to vector<1x8x24xf32>
    %85 = vector.shape_cast %84 : vector<1x8x24xf32> to vector<8x24xf32>
    %cst_25 = arith.constant 0.333333343 : f32
    %86 = vector.broadcast %cst_25 : f32 to vector<8x24xf32>
    %87 = arith.mulf %86, %83 : vector<8x24xf32>
    %cst_26 = arith.constant 0.666666686 : f32
    %88 = vector.broadcast %cst_26 : f32 to vector<8x24xf32>
    %89 = arith.mulf %88, %81 : vector<8x24xf32>
    %90 = arith.addf %87, %89 : vector<8x24xf32>
    %cst_27 = arith.constant 0.666666686 : f32
    %91 = vector.broadcast %cst_27 : f32 to vector<8x24xf32>
    %92 = arith.mulf %91, %81 : vector<8x24xf32>
    %cst_28 = arith.constant 0.333333343 : f32
    %93 = vector.broadcast %cst_28 : f32 to vector<8x24xf32>
    %94 = arith.mulf %93, %85 : vector<8x24xf32>
    %95 = arith.addf %92, %94 : vector<8x24xf32>
    %96 = arith.subf %11, %90 : vector<8x24xf32>
    %97 = math.exp %96 : vector<8x24xf32>
    %98 = arith.subf %11, %81 : vector<8x24xf32>
    %99 = math.exp %98 : vector<8x24xf32>
    %100 = arith.subf %11, %95 : vector<8x24xf32>
    %101 = math.exp %100 : vector<8x24xf32>
    %cst_29 = arith.constant 6.000000e+00 : f32
    %102 = vector.broadcast %cst_29 : f32 to vector<8x24xf32>
    %103 = arith.mulf %97, %102 : vector<8x24xf32>
    %104 = arith.addf %76, %103 : vector<8x24xf32>
    %cst_30 = arith.constant 7.000000e+00 : f32
    %105 = vector.broadcast %cst_30 : f32 to vector<8x24xf32>
    %106 = arith.mulf %99, %105 : vector<8x24xf32>
    %107 = arith.addf %104, %106 : vector<8x24xf32>
    %cst_31 = arith.constant 8.000000e+00 : f32
    %108 = vector.broadcast %cst_31 : f32 to vector<8x24xf32>
    %109 = arith.mulf %101, %108 : vector<8x24xf32>
    %110 = arith.addf %107, %109 : vector<8x24xf32>
    %111 = arith.addf %97, %99 : vector<8x24xf32>
    %112 = arith.addf %111, %101 : vector<8x24xf32>
    %113 = arith.addf %79, %112 : vector<8x24xf32>
    %114 = vector.extract_strided_slice %10 {offsets = [3, 0, 0], sizes = [1, 8, 24], strides = [1, 1, 1]} : vector<4x8x24xf32> to vector<1x8x24xf32>
    %115 = vector.shape_cast %114 : vector<1x8x24xf32> to vector<8x24xf32>
    %116 = vector.extract_strided_slice %10 {offsets = [2, 0, 0], sizes = [1, 8, 24], strides = [1, 1, 1]} : vector<4x8x24xf32> to vector<1x8x24xf32>
    %117 = vector.shape_cast %116 : vector<1x8x24xf32> to vector<8x24xf32>
    %cst_32 = arith.constant 0.333333343 : f32
    %118 = vector.broadcast %cst_32 : f32 to vector<8x24xf32>
    %119 = arith.mulf %118, %117 : vector<8x24xf32>
    %cst_33 = arith.constant 0.666666686 : f32
    %120 = vector.broadcast %cst_33 : f32 to vector<8x24xf32>
    %121 = arith.mulf %120, %115 : vector<8x24xf32>
    %122 = arith.addf %119, %121 : vector<8x24xf32>
    %cst_34 = arith.constant 0.666666686 : f32
    %123 = vector.broadcast %cst_34 : f32 to vector<8x24xf32>
    %124 = arith.mulf %123, %115 : vector<8x24xf32>
    %cst_35 = arith.constant 0.333333343 : f32
    %125 = vector.broadcast %cst_35 : f32 to vector<8x24xf32>
    %126 = arith.mulf %125, %115 : vector<8x24xf32>
    %127 = arith.addf %124, %126 : vector<8x24xf32>
    %128 = arith.subf %11, %122 : vector<8x24xf32>
    %129 = math.exp %128 : vector<8x24xf32>
    %130 = arith.subf %11, %115 : vector<8x24xf32>
    %131 = math.exp %130 : vector<8x24xf32>
    %132 = arith.subf %11, %127 : vector<8x24xf32>
    %133 = math.exp %132 : vector<8x24xf32>
    %cst_36 = arith.constant 9.000000e+00 : f32
    %134 = vector.broadcast %cst_36 : f32 to vector<8x24xf32>
    %135 = arith.mulf %129, %134 : vector<8x24xf32>
    %136 = arith.addf %110, %135 : vector<8x24xf32>
    %cst_37 = arith.constant 1.000000e+01 : f32
    %137 = vector.broadcast %cst_37 : f32 to vector<8x24xf32>
    %138 = arith.mulf %131, %137 : vector<8x24xf32>
    %139 = arith.addf %136, %138 : vector<8x24xf32>
    %cst_38 = arith.constant 1.100000e+01 : f32
    %140 = vector.broadcast %cst_38 : f32 to vector<8x24xf32>
    %141 = arith.mulf %133, %140 : vector<8x24xf32>
    %142 = arith.addf %139, %141 : vector<8x24xf32>
    %143 = arith.addf %129, %131 : vector<8x24xf32>
    %144 = arith.addf %143, %133 : vector<8x24xf32>
    %145 = arith.addf %113, %144 : vector<8x24xf32>
    %146 = arith.divf %142, %145 : vector<8x24xf32>
    %c0_39 = arith.constant 0 : index
    %c0_40 = arith.constant 0 : index
    %c0_41 = arith.constant 0 : index
    %147 = vector.load %arg5[%c0_39, %c0_40, %c0_41] : memref<1x8x24xf32, #tpu.memory_space<vmem>>, vector<1x8x24xf32>
    %148 = vector.shape_cast %147 : vector<1x8x24xf32> to vector<8x24xf32>
    %149 = vector.shape_cast %146 : vector<8x24xf32> to vector<1x8x24xf32>
    tpu.vector_store %arg5[%c0_39, %c0_40, %c0_41], %149 {strides = array<i32>} : memref<1x8x24xf32, #tpu.memory_space<vmem>>, vector<1x8x24xf32>,
    return
  }
  func.func @transform_0(%arg0: i32, %arg1: i32) -> (i32, i32, i32, i32) {
    %c0_i32 = arith.constant 0 : i32
    %c0_i32_0 = arith.constant 0 : i32
    %c0_i32_1 = arith.constant 0 : i32
    %c0_i32_2 = arith.constant 0 : i32
    return %arg0, %c0_i32, %c0_i32_0, %c0_i32_1 : i32, i32, i32, i32
  }
  func.func @transform_1(%arg0: i32, %arg1: i32) -> (i32, i32) {
    %c0_i32 = arith.constant 0 : i32
    %c0_i32_0 = arith.constant 0 : i32
    return %arg1, %c0_i32 : i32, i32
  }
  func.func @transform_2(%arg0: i32, %arg1: i32) -> (i32, i32) {
    %c0_i32 = arith.constant 0 : i32
    %c0_i32_0 = arith.constant 0 : i32
    %c0_i32_1 = arith.constant 0 : i32
    return %c0_i32, %c0_i32_0 : i32, i32
  }
  func.func @transform_3(%arg0: i32, %arg1: i32) -> (i32, i32, i32) {
    %c0_i32 = arith.constant 0 : i32
    %c0_i32_0 = arith.constant 0 : i32
    return %arg0, %arg1, %c0_i32 : i32, i32, i32
  }
}

</mosaic_0001>

<llo_original>
// kernel: leastereo_forward.4
$region0: #{leastereo_forward.4}
  #allocation0 [shape = 'u32[]', space=smem, size = 0x4, offset = 0x4, fixed_abs, tag = 'smem constant byte address 0x4 - core index']
  #allocation1 [shape = 'u32[72,128]{1,0:T(1,128)}', space=vmem, size = 0x9000, scoped, tag = 'internal scratch']
  %s0 = inlined_call_operand.vmem [shape: f32[4,8,8], index: 0, kind: input, shape index: {}, may-alias: {0,1}]
  %s1 = inlined_call_operand.vmem [shape: f32[4,8,8], index: 1, kind: input, shape index: {}, may-alias: {0,1}]
  %s2 = inlined_call_operand.vmem [shape: f32[2,4,8,8], index: 2, kind: output, shape index: {}]
  %s3 = sld [smem:[#allocation0]]
  $region41: #{leastereo_forward.4} parent=0
    _
  %s5 = ssub.s32 1, %s3
  %s6 = scalar_select 0, %s5, %s3
  loop: start=0, step=1, limit=4
  $region2: #{leastereo_forward.4} parent=0 // loop_pre_header
    _
  $region3: #{leastereo_forward.4} parent=0 // loop_header
    %s8 = sphi 0, %s12
    %p9 = scmp.ge.s32.totalorder %s8, 4
    %s15 = sphi 0, %s27
    %s16 = sphi 0, %s23
    %s17 = sphi 0, %s15
    %s18 = sphi 0, %s16
    %s19 = sphi 0, %s17
    %s20 = sphi 0, %s18
    %s32 = sphi 0, %s34
    %s35 = sphi 0, %s32
    %s36 = sphi 0, %s35
    %s52 = sphi 0, %s36
    %s62 = sphi 0, %s64
    %s65 = sphi 0, %s62
    %s66 = sphi 0, %s65
    %s82 = sphi 0, %s66
    %s90 = sphi 0, %s92
    %s93 = sphi 0, %s90
    %s94 = sphi 0, %s93
    %s110 = sphi 0, %s94
  $region4: #{leastereo_forward.4} parent=0 // loop_header_branch
    %11 = sbr.rel (%p9) target = $region8
  $region5: #{leastereo_forward.4} parent=0 // loop_body
    %s13 = ssub.s32 %s8, 1
    %s14 = ssub.s32 %s8, 2
    %s21 = sadd.s32 1, %s16
    %p22 = scmp.ge.s32.totalorder %s21, 1
    %s23 = scalar_select %p22, 0, %s21
    %s24 = sadd.s32 1, %s15
    %s25 = scalar_select %p22, %s24, %s15
    %p26 = scmp.ge.s32.totalorder %s25, 2
    %s27 = scalar_select %p26, 0, %s25
    %s28 = ssub.s32 %s15, %s27
    %s29 = ssub.s32 %s16, %s23
    %s30 = sor.u32 %s28, %s29
    %p31 = scmp.eq.s32.totalorder %s30, 0
    %s33 = sadd.s32 %s32, 1
    %s34 = scalar_select %p31, %s32, %s33
    %p37 = pneg %p31
    %p38 = scmp.eq.s32.totalorder %s8, 1
    %p39 = por %p37, %p38
    %p40 = scmp.ne.s32.totalorder %s32, %s35
    %p41 = scmp.eq.s32.totalorder %s8, 0
    %p42 = por %p40, %p41
    %p43 = scmp.ne.s32.totalorder %s32, %s35
    %p44 = scmp.eq.s32.totalorder %s13, 1
    %p45 = por %p43, %p44
    %p46 = scmp.ne.s32.totalorder %s35, %s36
    %p47 = scmp.eq.s32.totalorder %s13, 0
    %p48 = por %p46, %p47
    %p49 = scmp.ne.s32.totalorder %s35, %s36
    %p50 = scmp.eq.s32.totalorder %s14, 1
    %p51 = por %p49, %p50
    %p53 = scmp.ne.s32.totalorder %s36, %s52
    %p54 = scmp.eq.s32.totalorder %s14, 0
    %p55 = por %p53, %p54
    %s56 = sadd.s32 %s15, 2
    %s57 = sadd.s32 %s27, 2
    %s58 = ssub.s32 %s56, %s57
    %s59 = ssub.s32 %s16, %s23
    %s60 = sor.u32 %s58, %s59
    %p61 = scmp.eq.s32.totalorder %s60, 0
    %s63 = sadd.s32 %s62, 1
    %s64 = scalar_select %p61, %s62, %s63
    %p67 = pneg %p61
    %p68 = scmp.eq.s32.totalorder %s8, 1
    %p69 = por %p67, %p68
    %p70 = scmp.ne.s32.totalorder %s62, %s65
    %p71 = scmp.eq.s32.totalorder %s8, 0
    %p72 = por %p70, %p71
    %p73 = scmp.ne.s32.totalorder %s62, %s65
    %p74 = scmp.eq.s32.totalorder %s13, 1
    %p75 = por %p73, %p74
    %p76 = scmp.ne.s32.totalorder %s65, %s66
    %p77 = scmp.eq.s32.totalorder %s13, 0
    %p78 = por %p76, %p77
    %p79 = scmp.ne.s32.totalorder %s65, %s66
    %p80 = scmp.eq.s32.totalorder %s14, 1
    %p81 = por %p79, %p80
    %p83 = scmp.ne.s32.totalorder %s66, %s82
    %p84 = scmp.eq.s32.totalorder %s14, 0
    %p85 = por %p83, %p84
    %s86 = ssub.s32 %s15, %s27
    %s87 = ssub.s32 %s16, %s23
    %s88 = sor.u32 %s86, %s87
    %p89 = scmp.eq.s32.totalorder %s88, 0
    %s91 = sadd.s32 %s90, 1
    %s92 = scalar_select %p89, %s90, %s91
    %p95 = pneg %p89
    %p96 = scmp.eq.s32.totalorder %s8, 1
    %p97 = por %p95, %p96
    %p98 = scmp.ne.s32.totalorder %s90, %s93
    %p99 = scmp.eq.s32.totalorder %s8, 0
    %p100 = por %p98, %p99
    %p101 = scmp.ne.s32.totalorder %s90, %s93
    %p102 = scmp.eq.s32.totalorder %s13, 1
    %p103 = por %p101, %p102
    %p104 = scmp.ne.s32.totalorder %s93, %s94
    %p105 = scmp.eq.s32.totalorder %s13, 0
    %p106 = por %p104, %p105
    %p107 = scmp.ne.s32.totalorder %s93, %s94
    %p108 = scmp.eq.s32.totalorder %s14, 1
    %p109 = por %p107, %p108
    %p111 = scmp.ne.s32.totalorder %s94, %s110
    %p112 = scmp.eq.s32.totalorder %s14, 0
    %p113 = por %p111, %p112
    %p114 = scmp.le.s32.totalorder 1, %s8
    %p115 = scmp.lt.s32.totalorder %s8, 3
    %p116 = pnand %p114, %p115
    %p117 = pneg %p116
    // Predicated region
    $region9: #{leastereo_forward.4} parent=5 // pred_check
      _
    $region10: #{leastereo_forward.4} parent=5 // pred_check_branch
      %119 = sbr.rel (%p116) target = $region12
    $region11: #{leastereo_forward.4} parent=5 // pred_region
      %s120 = ssub.s32 %s8, 1
    $region12: #{leastereo_forward.4} parent=5 // pred_fallthru
      _
    %p121 = scmp.lt.s32.totalorder %s8, 2
    // Predicated region
    $region13: #{leastereo_forward.4} parent=5 // pred_check
      %p122 = pneg %p121
    $region14: #{leastereo_forward.4} parent=5 // pred_check_branch
      %124 = sbr.rel (%p122) target = $region16
    $region15: #{leastereo_forward.4} parent=5 // pred_region
      // Predicated region
      $region17: #{leastereo_forward.4} parent=15 // pred_check
        %p125 = pneg %p42
      $region18: #{leastereo_forward.4} parent=15 // pred_check_branch
        %127 = sbr.rel (%p125) target = $region20
      $region19: #{leastereo_forward.4} parent=15 // pred_region
        %p128 = scmp.lt.s32.totalorder %s15, 3
        %s129 = scalar_select %p128, %s15, 3
        %p130 = scmp.lt.s32.totalorder %s16, 0
        %s131 = scalar_select %p130, %s16, 0
        %s132 = sadd.s32 %s131, %s129
        %s133 = smul.addr %s132, 8
        %s134 = scalar_lea.vmem %s0, %s133
      $region20: #{leastereo_forward.4} parent=15 // pred_fallthru
        _
      // Predicated region
      $region21: #{leastereo_forward.4} parent=15 // pred_check
        %p135 = pneg %p72
      $region22: #{leastereo_forward.4} parent=15 // pred_check_branch
        %137 = sbr.rel (%p135) target = $region24
      $region23: #{leastereo_forward.4} parent=15 // pred_region
        %s138 = sadd.s32 %s15, 2
        %p139 = scmp.lt.s32.totalorder %s138, 3
        %s140 = scalar_select %p139, %s138, 3
        %p141 = scmp.lt.s32.totalorder %s16, 0
        %s142 = scalar_select %p141, %s16, 0
        %s143 = sadd.s32 %s142, %s140
        %s144 = smul.addr %s143, 8
        %s145 = scalar_lea.vmem %s1, %s144
        %s146 = sadd.s32 %s15, 2
      $region24: #{leastereo_forward.4} parent=15 // pred_fallthru
        _
    $region16: #{leastereo_forward.4} parent=5 // pred_fallthru
      _
    %p147 = scmp.le.s32.totalorder 1, %s8
    %p148 = scmp.lt.s32.totalorder %s8, 3
    %p149 = pnand %p147, %p148
    %p150 = pneg %p149
    // Predicated region
    $region25: #{leastereo_forward.4} parent=5 // pred_check
      _
    $region26: #{leastereo_forward.4} parent=5 // pred_check_branch
      %152 = sbr.rel (%p149) target = $region28
    $region27: #{leastereo_forward.4} parent=5 // pred_region
      %s153 = ssub.s32 %s8, 1
      %p154 = scmp.lt.s32.totalorder %s17, 3
      %s155 = scalar_select %p154, %s17, 3
      %p156 = scmp.lt.s32.totalorder %s18, 0
      %s157 = scalar_select %p156, %s18, 0
      %s158 = sadd.s32 %s157, %s155
      %s159 = smul.addr %s158, 8
      %s160 = scalar_lea.vmem %s0, %s159
      %p161 = pneg %p48
      %p162 = pneg %p45
      %s163 = sadd.s32 %s17, 2
      %p164 = scmp.lt.s32.totalorder %s163, 3
      %s165 = scalar_select %p164, %s163, 3
      %p166 = scmp.lt.s32.totalorder %s18, 0
      %s167 = scalar_select %p166, %s18, 0
      %s168 = sadd.s32 %s167, %s165
      %s169 = smul.addr %s168, 8
      %s170 = scalar_lea.vmem %s1, %s169
      %p171 = pneg %p78
      %p172 = pneg %p75
      %p173 = pneg %p106
      %p174 = pneg %p103
      %p175 = scmp.lt.s32.totalorder %s17, 1
      %s176 = scalar_select %p175, %s17, 1
      %p177 = scmp.lt.s32.totalorder %s18, 0
      %s178 = scalar_select %p177, %s18, 0
      %s179 = smul.addr %s176, 4
      %s180 = sadd.s32 %s178, %s179
      %s181 = smul.addr %s180, 8
      %s182 = scalar_lea.vmem %s2, %s181
      %p183 = scmp.lt.s32.totalorder %s17, 3
      %s184 = scalar_select %p183, %s17, 3
      %p185 = scmp.lt.s32.totalorder %s18, 0
      %s186 = scalar_select %p185, %s18, 0
      %s187 = sadd.s32 %s186, %s184
      %s188 = smul.addr %s187, 8
      %s189 = scalar_lea.vmem %s0, %s188
      %s190 = sadd.s32 %s17, 2
      %p191 = scmp.lt.s32.totalorder %s190, 3
      %s192 = scalar_select %p191, %s190, 3
      %p193 = scmp.lt.s32.totalorder %s18, 0
      %s194 = scalar_select %p193, %s18, 0
      %s195 = sadd.s32 %s194, %s192
      %s196 = smul.addr %s195, 8
      %s197 = scalar_lea.vmem %s1, %s196
      %s198 = sadd.s32 %s17, 2
      %p199 = scmp.lt.s32.totalorder %s17, 1
      %s200 = scalar_select %p199, %s17, 1
      %p201 = scmp.lt.s32.totalorder %s18, 0
      %s202 = scalar_select %p201, %s18, 0
      %s203 = smul.addr %s200, 4
      %s204 = sadd.s32 %s202, %s203
      %s205 = smul.addr %s204, 8
      %s206 = scalar_lea.vmem %s2, %s205
      %v207 = vld [vmem:[%s189] sm:$0xff]
      %v208 = vld [vmem:[%s197] sm:$0xff]
      %v209 = vlaneseq
      %v210 = vand.u32 %v209, 127
      %vm211 = vcmp.ge.s32.totalorder %v210, 0
      %v212 = vadd.f32 %v207, %v208
      %v213 = vsel %vm211, %v212, 0.0
      %vm214 = vcmask 64512
      %215 = vst.msk [vmem:[%s206] sm:$0xff] %vm214, %v213
      %217 = vrot.lane.b32.xlu0 %v208, 121
      %v218 = vpop.permute.xlu0 %217
      %220 = vrot.lane.b32.xlu0 %v208, 1
      %v221 = vpop.permute.xlu0 %220
      %vm223 = vcmask 7168
      %v224 = vsel %vm223, %v218, %v221
      %vm225 = vcmp.ge.s32.totalorder %v210, 1
      %v226 = vadd.f32 %v207, %v224
      %v227 = vsel %vm225, %v226, 0.0
      %s228 = scalar_lea.vmem %s206, 8
      %229 = vst.msk [vmem:[%s228] sm:$0xff] %vm214, %v227
      %230 = vrot.lane.b32.xlu0 %v208, 122
      %v231 = vpop.permute.xlu0 %230
      %233 = vrot.lane.b32.xlu0 %v208, 2
      %v234 = vpop.permute.xlu0 %233
      %vm236 = vcmask 15360
      %v237 = vsel %vm236, %v231, %v234
      %vm238 = vcmp.ge.s32.totalorder %v210, 2
      %v239 = vadd.f32 %v207, %v237
      %v240 = vsel %vm238, %v239, 0.0
      %s241 = scalar_lea.vmem %s206, 16
      %242 = vst.msk [vmem:[%s241] sm:$0xff] %vm214, %v240
      %243 = vrot.lane.b32.xlu0 %v208, 123
      %v244 = vpop.permute.xlu0 %243
      %246 = vrot.lane.b32.xlu0 %v208, 3
      %v247 = vpop.permute.xlu0 %246
      %vm249 = vcmask 23552
      %v250 = vsel %vm249, %v244, %v247
      %vm251 = vcmp.ge.s32.totalorder %v210, 3
      %v252 = vadd.f32 %v207, %v250
      %v253 = vsel %vm251, %v252, 0.0
      %s254 = scalar_lea.vmem %s206, 24
      %255 = vst.msk [vmem:[%s254] sm:$0xff] %vm214, %v253
      %p256 = scmp.lt.s32.totalorder %s17, 1
      %s257 = scalar_select %p256, %s17, 1
      %p258 = scmp.lt.s32.totalorder %s18, 0
      %s259 = scalar_select %p258, %s18, 0
      %s260 = smul.addr %s257, 4
      %s261 = sadd.s32 %s259, %s260
      %s262 = smul.addr %s261, 8
      %s263 = scalar_lea.vmem %s2, %s262
      // Predicated region
      $region29: #{leastereo_forward.4} parent=27 // pred_check
        %p264 = pneg %p103
      $region30: #{leastereo_forward.4} parent=27 // pred_check_branch
        %266 = sbr.rel (%p264) target = $region32
      $region31: #{leastereo_forward.4} parent=27 // pred_region
        _
      $region32: #{leastereo_forward.4} parent=27 // pred_fallthru
        _
    $region28: #{leastereo_forward.4} parent=5 // pred_fallthru
      _
    %p267 = scmp.le.s32.totalorder 2, %s8
    // Predicated region
    $region33: #{leastereo_forward.4} parent=5 // pred_check
      %p268 = pneg %p267
    $region34: #{leastereo_forward.4} parent=5 // pred_check_branch
      %270 = sbr.rel (%p268) target = $region36
    $region35: #{leastereo_forward.4} parent=5 // pred_region
      %s271 = ssub.s32 %s8, 2
      // Predicated region
      $region37: #{leastereo_forward.4} parent=35 // pred_check
        %p272 = pneg %p109
      $region38: #{leastereo_forward.4} parent=35 // pred_check_branch
        %274 = sbr.rel (%p272) target = $region40
      $region39: #{leastereo_forward.4} parent=35 // pred_region
        %p275 = scmp.lt.s32.totalorder %s19, 1
        %s276 = scalar_select %p275, %s19, 1
        %p277 = scmp.lt.s32.totalorder %s20, 0
        %s278 = scalar_select %p277, %s20, 0
        %s279 = smul.addr %s276, 4
        %s280 = sadd.s32 %s278, %s279
        %s281 = smul.addr %s280, 8
        %s282 = scalar_lea.vmem %s2, %s281
      $region40: #{leastereo_forward.4} parent=35 // pred_fallthru
        _
    $region36: #{leastereo_forward.4} parent=5 // pred_fallthru
      _
  $region6: #{leastereo_forward.4} parent=0 // loop_footer
    %s12 = sadd.s32 1, %s8
  $region7: #{leastereo_forward.4} parent=0 // loop_footer_branch
    %7 = sbr.rel target = $region3
  $region8: #{leastereo_forward.4} parent=0 // loop_exit
    _

// kernel: leastereo_forward.3
$region0: #{leastereo_forward.3}
  #allocation0 [shape = 'u32[]', space=smem, size = 0x4, offset = 0x4, fixed_abs, tag = 'smem constant byte address 0x4 - core index']
  #allocation1 [shape = 'u32[72,128]{1,0:T(1,128)}', space=vmem, size = 0x9000, scoped, tag = 'internal scratch']
  %s0 = inlined_call_operand.vmem [shape: f32[3,4], index: 0, kind: input, shape index: {}]
  %s1 = inlined_call_operand.vmem [shape: f32[4,4], index: 1, kind: input, shape index: {}]
  %s2 = inlined_call_operand.vmem [shape: f32[4,3,8,8], index: 2, kind: input, shape index: {}]
  %s3 = inlined_call_operand.vmem [shape: f32[4,8,8], index: 3, kind: output, shape index: {}]
  %s4 = sld [smem:[#allocation0]]
  $region53: #{leastereo_forward.3} parent=0
    _
  %s6 = ssub.s32 1, %s4
  %s7 = scalar_select 0, %s6, %s4
  $region1: #{leastereo_forward.3} parent=0
    #allocation2 [shape = 'u8[2048]{0}', space=smem, size = 0x800, scoped, tag = 'input window, operand 0, single buffered']
    #allocation3 [shape = 's32[2]{0}', space=sflag, size = 0x8, scoped, tag = 'scoped memory for leastereo_forward.3']
    #allocation4 [shape = 'u8[2048]{0}', space=smem, size = 0x800, scoped, tag = 'input window, operand 1, single buffered']
    #allocation5 [shape = 's32[1]{0}', space=sflag, size = 0x4, scoped, tag = 'scoped memory for leastereo_forward.3']
    %8 = vsyncpa [#allocation3], 0
    %9 = vsyncpa [#allocation5], 0
    loop: start=0, step=1, limit=6
    $region2: #{leastereo_forward.3} parent=1 // loop_pre_header
      _
    $region3: #{leastereo_forward.3} parent=1 // loop_header
      %s11 = sphi 0, %s15
      %p12 = scmp.ge.s32.totalorder %s11, 6
      %s19 = sphi 0, %s19
      %s21 = sphi 0, %s19
      %s22 = sphi 0, %s21
      %s36 = sphi 0, %s22
      %s40 = sphi 0, %s40
      %s42 = sphi 0, %s40
      %s43 = sphi 0, %s42
      %s57 = sphi 0, %s43
      %s63 = sphi 0, %s65
      %s66 = sphi 0, %s63
      %s67 = sphi 0, %s66
      %s83 = sphi 0, %s67
      %s89 = sphi 0, %s91
      %s92 = sphi 0, %s89
      %s93 = sphi 0, %s92
      %s109 = sphi 0, %s93
    $region4: #{leastereo_forward.3} parent=1 // loop_header_branch
      %14 = sbr.rel (%p12) target = $region8
    $region5: #{leastereo_forward.3} parent=1 // loop_body
      %s16 = ssub.s32 %s11, 1
      %s17 = ssub.s32 %s11, 2
      %s18 = sadd.s32 %s11, 1
      %s20 = sadd.s32 %s19, 1
      %p23 = scmp.eq.s32.totalorder %s11, 3
      %p24 = scmp.ne.s32.totalorder %s19, %s21
      %p25 = scmp.eq.s32.totalorder %s11, 0
      %p26 = por %p24, %p25
      %p27 = scmp.ne.s32.totalorder %s19, %s21
      %p28 = scmp.eq.s32.totalorder %s16, 3
      %p29 = por %p27, %p28
      %p30 = scmp.ne.s32.totalorder %s21, %s22
      %p31 = scmp.eq.s32.totalorder %s16, 0
      %p32 = por %p30, %p31
      %p33 = scmp.ne.s32.totalorder %s21, %s22
      %p34 = scmp.eq.s32.totalorder %s17, 3
      %p35 = por %p33, %p34
      %p37 = scmp.ne.s32.totalorder %s22, %s36
      %p38 = scmp.eq.s32.totalorder %s17, 0
      %p39 = por %p37, %p38
      %s41 = sadd.s32 %s40, 1
      %p44 = scmp.eq.s32.totalorder %s11, 3
      %p45 = scmp.ne.s32.totalorder %s40, %s42
      %p46 = scmp.eq.s32.totalorder %s11, 0
      %p47 = por %p45, %p46
      %p48 = scmp.ne.s32.totalorder %s40, %s42
      %p49 = scmp.eq.s32.totalorder %s16, 3
      %p50 = por %p48, %p49
      %p51 = scmp.ne.s32.totalorder %s42, %s43
      %p52 = scmp.eq.s32.totalorder %s16, 0
      %p53 = por %p51, %p52
      %p54 = scmp.ne.s32.totalorder %s42, %s43
      %p55 = scmp.eq.s32.totalorder %s17, 3
      %p56 = por %p54, %p55
      %p58 = scmp.ne.s32.totalorder %s43, %s57
      %p59 = scmp.eq.s32.totalorder %s17, 0
      %p60 = por %p58, %p59
      %s61 = ssub.s32 %s11, %s18
      %p62 = scmp.eq.s32.totalorder %s61, 0
      %s64 = sadd.s32 %s63, 1
      %s65 = scalar_select %p62, %s63, %s64
      %p68 = pneg %p62
      %p69 = scmp.eq.s32.totalorder %s11, 3
      %p70 = por %p68, %p69
      %p71 = scmp.ne.s32.totalorder %s63, %s66
      %p72 = scmp.eq.s32.totalorder %s11, 0
      %p73 = por %p71, %p72
      %p74 = scmp.ne.s32.totalorder %s63, %s66
      %p75 = scmp.eq.s32.totalorder %s16, 3
      %p76 = por %p74, %p75
      %p77 = scmp.ne.s32.totalorder %s66, %s67
      %p78 = scmp.eq.s32.totalorder %s16, 0
      %p79 = por %p77, %p78
      %p80 = scmp.ne.s32.totalorder %s66, %s67
      %p81 = scmp.eq.s32.totalorder %s17, 3
      %p82 = por %p80, %p81
      %p84 = scmp.ne.s32.totalorder %s67, %s83
      %p85 = scmp.eq.s32.totalorder %s17, 0
      %p86 = por %p84, %p85
      %s87 = ssub.s32 %s11, %s18
      %p88 = scmp.eq.s32.totalorder %s87, 0
      %s90 = sadd.s32 %s89, 1
      %s91 = scalar_select %p88, %s89, %s90
      %p94 = pneg %p88
      %p95 = scmp.eq.s32.totalorder %s11, 3
      %p96 = por %p94, %p95
      %p97 = scmp.ne.s32.totalorder %s89, %s92
      %p98 = scmp.eq.s32.totalorder %s11, 0
      %p99 = por %p97, %p98
      %p100 = scmp.ne.s32.totalorder %s89, %s92
      %p101 = scmp.eq.s32.totalorder %s16, 3
      %p102 = por %p100, %p101
      %p103 = scmp.ne.s32.totalorder %s92, %s93
      %p104 = scmp.eq.s32.totalorder %s16, 0
      %p105 = por %p103, %p104
      %p106 = scmp.ne.s32.totalorder %s92, %s93
      %p107 = scmp.eq.s32.totalorder %s17, 3
      %p108 = por %p106, %p107
      %p110 = scmp.ne.s32.totalorder %s93, %s109
      %p111 = scmp.eq.s32.totalorder %s17, 0
      %p112 = por %p110, %p111
      %p113 = scmp.le.s32.totalorder 1, %s11
      %p114 = scmp.lt.s32.totalorder %s11, 5
      %p115 = pnand %p113, %p114
      %p116 = pneg %p115
      // Predicated region
      $region9: #{leastereo_forward.3} parent=5 // pred_check
        _
      $region10: #{leastereo_forward.3} parent=5 // pred_check_branch
        %118 = sbr.rel (%p115) target = $region12
      $region11: #{leastereo_forward.3} parent=5 // pred_region
        %s119 = ssub.s32 %s11, 1
        // Predicated region
        $region13: #{leastereo_forward.3} parent=11 // pred_check
          %p120 = pneg %p32
        $region14: #{leastereo_forward.3} parent=11 // pred_check_branch
          %122 = sbr.rel (%p120) target = $region16
        $region15: #{leastereo_forward.3} parent=11 // pred_region
          %124 = vsyncadd [#allocation3], 0
          %s126 = sshll.u32 %s0, 4
          %s127 = int_to_ptr.vmem [resolvable:$true] %s126
          %129 = dma.vmem_to_smem %s127, 64, [#allocation2], [#allocation3]
        $region16: #{leastereo_forward.3} parent=11 // pred_fallthru
          _
        // Predicated region
        $region17: #{leastereo_forward.3} parent=11 // pred_check
          %p130 = pneg %p53
        $region18: #{leastereo_forward.3} parent=11 // pred_check_branch
          %132 = sbr.rel (%p130) target = $region20
        $region19: #{leastereo_forward.3} parent=11 // pred_region
          %134 = vsyncadd [#allocation5], 0
          %s136 = sshll.u32 %s1, 4
          %s137 = int_to_ptr.vmem [resolvable:$true] %s136
          %139 = dma.vmem_to_smem %s137, 64, [#allocation4], [#allocation5]
        $region20: #{leastereo_forward.3} parent=11 // pred_fallthru
          _
      $region12: #{leastereo_forward.3} parent=5 // pred_fallthru
        _
      %p140 = scmp.lt.s32.totalorder %s11, 4
      // Predicated region
      $region21: #{leastereo_forward.3} parent=5 // pred_check
        %p141 = pneg %p140
      $region22: #{leastereo_forward.3} parent=5 // pred_check_branch
        %143 = sbr.rel (%p141) target = $region24
      $region23: #{leastereo_forward.3} parent=5 // pred_region
        // Predicated region
        $region25: #{leastereo_forward.3} parent=23 // pred_check
          %p144 = pneg %p73
        $region26: #{leastereo_forward.3} parent=23 // pred_check_branch
          %146 = sbr.rel (%p144) target = $region28
        $region27: #{leastereo_forward.3} parent=23 // pred_region
          %p147 = scmp.lt.s32.totalorder %s11, 3
          %s148 = scalar_select %p147, %s11, 3
          %s149 = smul.addr %s148, 3
          %s150 = smul.addr %s149, 8
          %s151 = scalar_lea.vmem %s2, %s150
        $region28: #{leastereo_forward.3} parent=23 // pred_fallthru
          _
      $region24: #{leastereo_forward.3} parent=5 // pred_fallthru
        _
      %p152 = scmp.le.s32.totalorder 1, %s11
      %p153 = scmp.lt.s32.totalorder %s11, 5
      %p154 = pnand %p152, %p153
      %p155 = pneg %p154
      // Predicated region
      $region29: #{leastereo_forward.3} parent=5 // pred_check
        _
      $region30: #{leastereo_forward.3} parent=5 // pred_check_branch
        %157 = sbr.rel (%p154) target = $region32
      $region31: #{leastereo_forward.3} parent=5 // pred_region
        %s158 = ssub.s32 %s11, 1
        // Predicated region
        $region33: #{leastereo_forward.3} parent=31 // pred_check
          %p159 = pneg %p32
        $region34: #{leastereo_forward.3} parent=31 // pred_check_branch
          %161 = sbr.rel (%p159) target = $region36
        $region35: #{leastereo_forward.3} parent=31 // pred_region
          %163 = dma.done [#allocation3], 64
        $region36: #{leastereo_forward.3} parent=31 // pred_fallthru
          _
        // Predicated region
        $region37: #{leastereo_forward.3} parent=31 // pred_check
          %p164 = pneg %p53
        $region38: #{leastereo_forward.3} parent=31 // pred_check_branch
          %166 = sbr.rel (%p164) target = $region40
        $region39: #{leastereo_forward.3} parent=31 // pred_region
          %168 = dma.done [#allocation5], 64
        $region40: #{leastereo_forward.3} parent=31 // pred_fallthru
          _
        %169 = sfence
        %p170 = pneg %p32
        %p171 = pneg %p29
        %p172 = pneg %p53
        %p173 = pneg %p50
        %p174 = scmp.lt.s32.totalorder %s16, 3
        %s175 = scalar_select %p174, %s16, 3
        %s176 = smul.addr %s175, 3
        %s177 = smul.addr %s176, 8
        %s178 = scalar_lea.vmem %s2, %s177
        %p179 = pneg %p79
        %p180 = pneg %p76
        %p181 = pneg %p105
        %p182 = pneg %p102
        %p183 = scmp.lt.s32.totalorder %s16, 3
        %s184 = scalar_select %p183, %s16, 3
        %s185 = smul.addr %s184, 8
        %s186 = scalar_lea.vmem %s3, %s185
        %p187 = scmp.lt.s32.totalorder %s16, 3
        %s188 = scalar_select %p187, %s16, 3
        %s189 = smul.addr %s188, 3
        %s190 = smul.addr %s189, 8
        %s191 = scalar_lea.vmem %s2, %s190
        %p192 = scmp.lt.s32.totalorder %s16, 3
        %s193 = scalar_select %p192, %s16, 3
        %s194 = smul.addr %s193, 8
        %s195 = scalar_lea.vmem %s3, %s194
        %v196 = vld [vmem:[%s191] sm:$0xff]
        %v197 = vld [vmem:[%s191 + $0x8] sm:$0xff]
        %v198 = vld [vmem:[%s191 + $0x10] sm:$0xff]
        %s199 = sld [smem:[#allocation2]]
        %v200 = vstv %s199
        %v201 = vmul.f32 %v200, %v196
        %s202 = sld [smem:[#allocation2 + $0x80]]
        %v203 = vstv %s202
        %v204 = vmul.f32 %v203, %v197
        %v205 = vadd.f32 %v201, %v204
        %s206 = sld [smem:[#allocation2 + $0x100]]
        %v207 = vstv %s206
        %v208 = vmul.f32 %v207, %v198
        %v209 = vadd.f32 %v205, %v208
        %s210 = smul.u32 %s16, 128
        %s211 = sld [smem:[#allocation4 + %s210]]
        %v212 = vmax.f32 %v209, 0.0
        %v213 = vstv %s211
        %v214 = vmul.f32 %v213, %v212
        %v215 = vadd.f32 %v214, 0.0
        %s216 = sld [smem:[#allocation2 + $0x1]]
        %v217 = vstv %s216
        %v218 = vmul.f32 %v217, %v196
        %s219 = sld [smem:[#allocation2 + $0x81]]
        %v220 = vstv %s219
        %v221 = vmul.f32 %v220, %v197
        %v222 = vadd.f32 %v218, %v221
        %s223 = sld [smem:[#allocation2 + $0x101]]
        %v224 = vstv %s223
        %v225 = vmul.f32 %v224, %v198
        %v226 = vadd.f32 %v222, %v225
        %s227 = sadd.s32 %s210, 1
        %s228 = sld [smem:[#allocation4 + %s227]]
        %v229 = vmax.f32 %v226, 0.0
        %v230 = vstv %s228
        %v231 = vmul.f32 %v230, %v229
        %v232 = vadd.f32 %v215, %v231
        %s233 = sld [smem:[#allocation2 + $0x2]]
        %v234 = vstv %s233
        %v235 = vmul.f32 %v234, %v196
        %s236 = sld [smem:[#allocation2 + $0x82]]
        %v237 = vstv %s236
        %v238 = vmul.f32 %v237, %v197
        %v239 = vadd.f32 %v235, %v238
        %s240 = sld [smem:[#allocation2 + $0x102]]
        %v241 = vstv %s240
        %v242 = vmul.f32 %v241, %v198
        %v243 = vadd.f32 %v239, %v242
        %s244 = sadd.s32 %s210, 2
        %s245 = sld [smem:[#allocation4 + %s244]]
        %v246 = vmax.f32 %v243, 0.0
        %v247 = vstv %s245
        %v248 = vmul.f32 %v247, %v246
        %v249 = vadd.f32 %v232, %v248
        %s250 = sld [smem:[#allocation2 + $0x3]]
        %v251 = vstv %s250
        %v252 = vmul.f32 %v251, %v196
        %s253 = sld [smem:[#allocation2 + $0x83]]
        %v254 = vstv %s253
        %v255 = vmul.f32 %v254, %v197
        %v256 = vadd.f32 %v252, %v255
        %s257 = sld [smem:[#allocation2 + $0x103]]
        %v258 = vstv %s257
        %v259 = vmul.f32 %v258, %v198
        %v260 = vadd.f32 %v256, %v259
        %s261 = sadd.s32 %s210, 3
        %s262 = sld [smem:[#allocation4 + %s261]]
        %v263 = vmax.f32 %v260, 0.0
        %v264 = vstv %s262
        %v265 = vmul.f32 %v264, %v263
        %v266 = vadd.f32 %v249, %v265
        %vm267 = vcmask 64512
        %268 = vst.msk [vmem:[%s195] sm:$0xff] %vm267, %v266
        %p269 = scmp.lt.s32.totalorder %s16, 3
        %s270 = scalar_select %p269, %s16, 3
        %s271 = smul.addr %s270, 8
        %s272 = scalar_lea.vmem %s3, %s271
        // Predicated region
        $region41: #{leastereo_forward.3} parent=31 // pred_check
          %p273 = pneg %p102
        $region42: #{leastereo_forward.3} parent=31 // pred_check_branch
          %275 = sbr.rel (%p273) target = $region44
        $region43: #{leastereo_forward.3} parent=31 // pred_region
          _
        $region44: #{leastereo_forward.3} parent=31 // pred_fallthru
          _
      $region32: #{leastereo_forward.3} parent=5 // pred_fallthru
        _
      %p276 = scmp.le.s32.totalorder 2, %s11
      // Predicated region
      $region45: #{leastereo_forward.3} parent=5 // pred_check
        %p277 = pneg %p276
      $region46: #{leastereo_forward.3} parent=5 // pred_check_branch
        %279 = sbr.rel (%p277) target = $region48
      $region47: #{leastereo_forward.3} parent=5 // pred_region
        %s280 = ssub.s32 %s11, 2
        // Predicated region
        $region49: #{leastereo_forward.3} parent=47 // pred_check
          %p281 = pneg %p108
        $region50: #{leastereo_forward.3} parent=47 // pred_check_branch
          %283 = sbr.rel (%p281) target = $region52
        $region51: #{leastereo_forward.3} parent=47 // pred_region
          %p284 = scmp.lt.s32.totalorder %s17, 3
          %s285 = scalar_select %p284, %s17, 3
          %s286 = smul.addr %s285, 8
          %s287 = scalar_lea.vmem %s3, %s286
        $region52: #{leastereo_forward.3} parent=47 // pred_fallthru
          _
      $region48: #{leastereo_forward.3} parent=5 // pred_fallthru
        _
    $region6: #{leastereo_forward.3} parent=1 // loop_footer
      %s15 = sadd.s32 1, %s11
    $region7: #{leastereo_forward.3} parent=1 // loop_footer_branch
      %10 = sbr.rel target = $region3
    $region8: #{leastereo_forward.3} parent=1 // loop_exit
      _
    %288 = vsyncpa [#allocation3], 1
    %s289 = scalar_lea.sflag [#allocation3], 1
    %290 = vsyncpa %s289, 1
    %291 = vsyncpa [#allocation5], 1

// kernel: leastereo_forward.5
$region0: #{leastereo_forward.5}
  #allocation0 [shape = 'u32[]', space=smem, size = 0x4, offset = 0x4, fixed_abs, tag = 'smem constant byte address 0x4 - core index']
  #allocation1 [shape = 'u32[72,128]{1,0:T(1,128)}', space=vmem, size = 0x9000, scoped, tag = 'internal scratch']
  %s0 = inlined_call_operand.vmem [shape: f32[2,4,8,8], index: 0, kind: input, shape index: {}]
  %s1 = inlined_call_operand.vmem [shape: f32[24,8], index: 1, kind: input, shape index: {}]
  %s2 = inlined_call_operand.vmem [shape: f32[8,24], index: 2, kind: input, shape index: {}]
  %s3 = inlined_call_operand.hbm [shape: f32[2,24,24], index: 3, kind: output, shape index: {}]
  %s4 = sld [smem:[#allocation0]]
  $region45: #{leastereo_forward.5} parent=0
    _
  %s6 = ssub.s32 1, %s4
  %s7 = scalar_select 0, %s6, %s4
  $region1: #{leastereo_forward.5} parent=0
    #allocation2 [shape = 'u8[8192]{0}', space=vmem, size = 0x2000, scoped, tag = 'output window, operand 0']
    #allocation3 [shape = 's32[2]{0}', space=sflag, size = 0x8, scoped, tag = 'scoped memory for leastereo_forward.5']
    %8 = vsyncpa [#allocation3], 0
    %s9 = scalar_lea.sflag [#allocation3], 1
    %10 = vsyncpa %s9, 0
    loop: start=0, step=1, limit=8
    $region2: #{leastereo_forward.5} parent=1 // loop_pre_header
      _
    $region3: #{leastereo_forward.5} parent=1 // loop_header
      %s12 = sphi 0, %s16
      %p13 = scmp.ge.s32.totalorder %s12, 8
      %s19 = sphi 0, %s31
      %s20 = sphi 0, %s27
      %s21 = sphi 0, %s19
      %s22 = sphi 0, %s20
      %s23 = sphi 0, %s21
      %s24 = sphi 0, %s22
      %s34 = sphi 0, %s36
      %s37 = sphi 0, %s34
      %s38 = sphi 0, %s37
      %s54 = sphi 0, %s38
      %s60 = sphi 0, %s62
      %s63 = sphi 0, %s60
      %s64 = sphi 0, %s63
      %s80 = sphi 0, %s64
      %s84 = sphi 0, %s84
      %s86 = sphi 0, %s84
      %s87 = sphi 0, %s86
      %s101 = sphi 0, %s87
      %s109 = sphi 0, %s111
      %s112 = sphi 0, %s109
      %s113 = sphi 0, %s112
      %s129 = sphi 0, %s113
    $region4: #{leastereo_forward.5} parent=1 // loop_header_branch
      %15 = sbr.rel (%p13) target = $region8
    $region5: #{leastereo_forward.5} parent=1 // loop_body
      %s17 = ssub.s32 %s12, 1
      %s18 = ssub.s32 %s12, 2
      %s25 = sadd.s32 1, %s20
      %p26 = scmp.ge.s32.totalorder %s25, 3
      %s27 = scalar_select %p26, 0, %s25
      %s28 = sadd.s32 1, %s19
      %s29 = scalar_select %p26, %s28, %s19
      %p30 = scmp.ge.s32.totalorder %s29, 2
      %s31 = scalar_select %p30, 0, %s29
      %s32 = ssub.s32 %s19, %s31
      %p33 = scmp.eq.s32.totalorder %s32, 0
      %s35 = sadd.s32 %s34, 1
      %s36 = scalar_select %p33, %s34, %s35
      %p39 = pneg %p33
      %p40 = scmp.eq.s32.totalorder %s12, 5
      %p41 = por %p39, %p40
      %p42 = scmp.ne.s32.totalorder %s34, %s37
      %p43 = scmp.eq.s32.totalorder %s12, 0
      %p44 = por %p42, %p43
      %p45 = scmp.ne.s32.totalorder %s34, %s37
      %p46 = scmp.eq.s32.totalorder %s17, 5
      %p47 = por %p45, %p46
      %p48 = scmp.ne.s32.totalorder %s37, %s38
      %p49 = scmp.eq.s32.totalorder %s17, 0
      %p50 = por %p48, %p49
      %p51 = scmp.ne.s32.totalorder %s37, %s38
      %p52 = scmp.eq.s32.totalorder %s18, 5
      %p53 = por %p51, %p52
      %p55 = scmp.ne.s32.totalorder %s38, %s54
      %p56 = scmp.eq.s32.totalorder %s18, 0
      %p57 = por %p55, %p56
      %s58 = ssub.s32 %s20, %s27
      %p59 = scmp.eq.s32.totalorder %s58, 0
      %s61 = sadd.s32 %s60, 1
      %s62 = scalar_select %p59, %s60, %s61
      %p65 = pneg %p59
      %p66 = scmp.eq.s32.totalorder %s12, 5
      %p67 = por %p65, %p66
      %p68 = scmp.ne.s32.totalorder %s60, %s63
      %p69 = scmp.eq.s32.totalorder %s12, 0
      %p70 = por %p68, %p69
      %p71 = scmp.ne.s32.totalorder %s60, %s63
      %p72 = scmp.eq.s32.totalorder %s17, 5
      %p73 = por %p71, %p72
      %p74 = scmp.ne.s32.totalorder %s63, %s64
      %p75 = scmp.eq.s32.totalorder %s17, 0
      %p76 = por %p74, %p75
      %p77 = scmp.ne.s32.totalorder %s63, %s64
      %p78 = scmp.eq.s32.totalorder %s18, 5
      %p79 = por %p77, %p78
      %p81 = scmp.ne.s32.totalorder %s64, %s80
      %p82 = scmp.eq.s32.totalorder %s18, 0
      %p83 = por %p81, %p82
      %s85 = sadd.s32 %s84, 1
      %p88 = scmp.eq.s32.totalorder %s12, 5
      %p89 = scmp.ne.s32.totalorder %s84, %s86
      %p90 = scmp.eq.s32.totalorder %s12, 0
      %p91 = por %p89, %p90
      %p92 = scmp.ne.s32.totalorder %s84, %s86
      %p93 = scmp.eq.s32.totalorder %s17, 5
      %p94 = por %p92, %p93
      %p95 = scmp.ne.s32.totalorder %s86, %s87
      %p96 = scmp.eq.s32.totalorder %s17, 0
      %p97 = por %p95, %p96
      %p98 = scmp.ne.s32.totalorder %s86, %s87
      %p99 = scmp.eq.s32.totalorder %s18, 5
      %p100 = por %p98, %p99
      %p102 = scmp.ne.s32.totalorder %s87, %s101
      %p103 = scmp.eq.s32.totalorder %s18, 0
      %p104 = por %p102, %p103
      %s105 = ssub.s32 %s19, %s31
      %s106 = ssub.s32 %s20, %s27
      %s107 = sor.u32 %s105, %s106
      %p108 = scmp.eq.s32.totalorder %s107, 0
      %s110 = sadd.s32 %s109, 1
      %s111 = scalar_select %p108, %s109, %s110
      %p114 = pneg %p108
      %p115 = scmp.eq.s32.totalorder %s12, 5
      %p116 = por %p114, %p115
      %p117 = scmp.ne.s32.totalorder %s109, %s112
      %p118 = scmp.eq.s32.totalorder %s12, 0
      %p119 = por %p117, %p118
      %p120 = scmp.ne.s32.totalorder %s109, %s112
      %p121 = scmp.eq.s32.totalorder %s17, 5
      %p122 = por %p120, %p121
      %p123 = scmp.ne.s32.totalorder %s112, %s113
      %p124 = scmp.eq.s32.totalorder %s17, 0
      %p125 = por %p123, %p124
      %p126 = scmp.ne.s32.totalorder %s112, %s113
      %p127 = scmp.eq.s32.totalorder %s18, 5
      %p128 = por %p126, %p127
      %p130 = scmp.ne.s32.totalorder %s113, %s129
      %p131 = scmp.eq.s32.totalorder %s18, 0
      %p132 = por %p130, %p131
      %p133 = scmp.le.s32.totalorder 1, %s12
      %p134 = scmp.lt.s32.totalorder %s12, 7
      %p135 = pnand %p133, %p134
      %p136 = pneg %p135
      // Predicated region
      $region9: #{leastereo_forward.5} parent=5 // pred_check
        _
      $region10: #{leastereo_forward.5} parent=5 // pred_check_branch
        %138 = sbr.rel (%p135) target = $region12
      $region11: #{leastereo_forward.5} parent=5 // pred_region
        %s139 = ssub.s32 %s12, 1
        // Predicated region
        $region13: #{leastereo_forward.5} parent=11 // pred_check
          %p140 = pneg %p97
        $region14: #{leastereo_forward.5} parent=11 // pred_check_branch
          %142 = sbr.rel (%p140) target = $region16
        $region15: #{leastereo_forward.5} parent=11 // pred_region
          _
        $region16: #{leastereo_forward.5} parent=11 // pred_fallthru
          _
      $region12: #{leastereo_forward.5} parent=5 // pred_fallthru
        _
      %p143 = scmp.lt.s32.totalorder %s12, 6
      // Predicated region
      $region17: #{leastereo_forward.5} parent=5 // pred_check
        %p144 = pneg %p143
      $region18: #{leastereo_forward.5} parent=5 // pred_check_branch
        %146 = sbr.rel (%p144) target = $region20
      $region19: #{leastereo_forward.5} parent=5 // pred_region
        // Predicated region
        $region21: #{leastereo_forward.5} parent=19 // pred_check
          %p147 = pneg %p44
        $region22: #{leastereo_forward.5} parent=19 // pred_check_branch
          %149 = sbr.rel (%p147) target = $region24
        $region23: #{leastereo_forward.5} parent=19 // pred_region
          %p150 = scmp.lt.s32.totalorder %s19, 1
          %s151 = scalar_select %p150, %s19, 1
          %s152 = smul.addr %s151, 4
          %s153 = smul.addr %s152, 8
          %s154 = scalar_lea.vmem %s0, %s153
        $region24: #{leastereo_forward.5} parent=19 // pred_fallthru
          _
        // Predicated region
        $region25: #{leastereo_forward.5} parent=19 // pred_check
          %p155 = pneg %p70
        $region26: #{leastereo_forward.5} parent=19 // pred_check_branch
          %157 = sbr.rel (%p155) target = $region28
        $region27: #{leastereo_forward.5} parent=19 // pred_region
          %p158 = scmp.lt.s32.totalorder %s20, 2
          %s159 = scalar_select %p158, %s20, 2
          %s160 = smul.addr %s159, 8
          %s161 = scalar_lea.vmem %s1, %s160
        $region28: #{leastereo_forward.5} parent=19 // pred_fallthru
          _
      $region20: #{leastereo_forward.5} parent=5 // pred_fallthru
        _
      %p162 = scmp.le.s32.totalorder 1, %s12
      %p163 = scmp.lt.s32.totalorder %s12, 7
      %p164 = pnand %p162, %p163
      %p165 = pneg %p164
      // Predicated region
      $region29: #{leastereo_forward.5} parent=5 // pred_check
        _
      $region30: #{leastereo_forward.5} parent=5 // pred_check_branch
        %167 = sbr.rel (%p164) target = $region32
      $region31: #{leastereo_forward.5} parent=5 // pred_region
        %s168 = ssub.s32 %s12, 1
        %p169 = scmp.lt.s32.totalorder %s21, 1
        %s170 = scalar_select %p169, %s21, 1
        %s171 = smul.addr %s170, 4
        %s172 = smul.addr %s171, 8
        %s173 = scalar_lea.vmem %s0, %s172
        %p174 = pneg %p50
        %p175 = pneg %p47
        %p176 = scmp.lt.s32.totalorder %s22, 2
        %s177 = scalar_select %p176, %s22, 2
        %s178 = smul.addr %s177, 8
        %s179 = scalar_lea.vmem %s1, %s178
        %p180 = pneg %p76
        %p181 = pneg %p73
        %p182 = pneg %p97
        %p183 = pneg %p94
        %p184 = pneg %p125
        %p185 = pneg %p122
        %s186 = sand.u32 %s112, 1
        %s187 = scalar_lea.sflag [#allocation3], %s186
        %s188 = sand.u32 %s112, 1
        %s189 = smul.addr %s188, 8
        %s190 = scalar_lea.vmem [#allocation2], %s189
        %p191 = scmp.lt.s32.totalorder %s21, 1
        %s192 = scalar_select %p191, %s21, 1
        %s193 = smul.addr %s192, 4
        %s194 = smul.addr %s193, 8
        %s195 = scalar_lea.vmem %s0, %s194
        %p196 = scmp.lt.s32.totalorder %s22, 2
        %s197 = scalar_select %p196, %s22, 2
        %s198 = smul.addr %s197, 8
        %s199 = scalar_lea.vmem %s1, %s198
        %v200 = vld [vmem:[%s195] sm:$0xff]
        %v201 = vld [vmem:[%s195 + $0x8] sm:$0xff]
        %v202 = vld [vmem:[%s195 + $0x10] sm:$0xff]
        %v203 = vld [vmem:[%s195 + $0x18] sm:$0xff]
        %v204 = vld [vmem:[%s199] sm:$0xff]
        %v205 = vld [vmem:[%s2] sm:$0xff]
        %vm206 = vcmask 64512
        %v208 = vsel %vm206, %v204, 0
        %210 = vmatpush.msra.mxu0 0.0
        %211 = vmatpush.msra.mxu0 0.0
        %212 = vmatpush.msra.mxu0 0.0
        %213 = vmatpush.msra.mxu0 0.0
        %214 = vmatpush.msra.mxu0 0.0
        %215 = vmatpush.msra.mxu0 0.0
        %216 = vmatpush.msra.mxu0 0.0
        %217 = vmatpush.msra.mxu0 0.0
        %218 = vmatpush.msra.mxu0 0.0
        %219 = vmatpush.msra.mxu0 0.0
        %220 = vmatpush.msra.mxu0 0.0
        %221 = vmatpush.msra.mxu0 0.0
        %222 = vmatpush.msra.mxu0 0.0
        %223 = vmatpush.msra.mxu0 0.0
        %224 = vmatpush.msra.mxu0 0.0
        %225 = vmatpush.msra.mxu0 %v200
        %226 = vmatmul.f32.gmra.mxu0 %v208
        %v227 = vpop.f32.mrf.mxu0
        %v228 = vadd.f32 0.0, %v227
        %229 = vdwg.mxu0
        %230 = vmatpush.msra.mxu0 0.0
        %231 = vmatpush.msra.mxu0 0.0
        %232 = vmatpush.msra.mxu0 0.0
        %233 = vmatpush.msra.mxu0 0.0
        %234 = vmatpush.msra.mxu0 0.0
        %235 = vmatpush.msra.mxu0 0.0
        %236 = vmatpush.msra.mxu0 0.0
        %237 = vmatpush.msra.mxu0 0.0
        %238 = vmatpush.msra.mxu0 0.0
        %239 = vmatpush.msra.mxu0 0.0
        %240 = vmatpush.msra.mxu0 0.0
        %241 = vmatpush.msra.mxu0 0.0
        %242 = vmatpush.msra.mxu0 0.0
        %243 = vmatpush.msra.mxu0 0.0
        %244 = vmatpush.msra.mxu0 0.0
        %245 = vmatpush.msra.mxu0 %v201
        %246 = vmatmul.f32.gmra.mxu0 %v208
        %v247 = vpop.f32.mrf.mxu0
        %v248 = vadd.f32 0.0, %v247
        %249 = vdwg.mxu0
        %250 = vmatpush.msra.mxu0 0.0
        %251 = vmatpush.msra.mxu0 0.0
        %252 = vmatpush.msra.mxu0 0.0
        %253 = vmatpush.msra.mxu0 0.0
        %254 = vmatpush.msra.mxu0 0.0
        %255 = vmatpush.msra.mxu0 0.0
        %256 = vmatpush.msra.mxu0 0.0
        %257 = vmatpush.msra.mxu0 0.0
        %258 = vmatpush.msra.mxu0 0.0
        %259 = vmatpush.msra.mxu0 0.0
        %260 = vmatpush.msra.mxu0 0.0
        %261 = vmatpush.msra.mxu0 0.0
        %262 = vmatpush.msra.mxu0 0.0
        %263 = vmatpush.msra.mxu0 0.0
        %264 = vmatpush.msra.mxu0 0.0
        %265 = vmatpush.msra.mxu0 %v202
        %266 = vmatmul.f32.gmra.mxu0 %v208
        %v267 = vpop.f32.mrf.mxu0
        %v268 = vadd.f32 0.0, %v267
        %269 = vdwg.mxu0
        %270 = vmatpush.msra.mxu0 0.0
        %271 = vmatpush.msra.mxu0 0.0
        %272 = vmatpush.msra.mxu0 0.0
        %273 = vmatpush.msra.mxu0 0.0
        %274 = vmatpush.msra.mxu0 0.0
        %275 = vmatpush.msra.mxu0 0.0
        %276 = vmatpush.msra.mxu0 0.0
        %277 = vmatpush.msra.mxu0 0.0
        %278 = vmatpush.msra.mxu0 0.0
        %279 = vmatpush.msra.mxu0 0.0
        %280 = vmatpush.msra.mxu0 0.0
        %281 = vmatpush.msra.mxu0 0.0
        %282 = vmatpush.msra.mxu0 0.0
        %283 = vmatpush.msra.mxu0 0.0
        %284 = vmatpush.msra.mxu0 0.0
        %285 = vmatpush.msra.mxu0 %v203
        %286 = vmatmul.f32.gmra.mxu0 %v208
        %v287 = vpop.f32.mrf.mxu0
        %v288 = vadd.f32 0.0, %v287
        %289 = vdwg.mxu0
        %v291 = vsel %vm206, %v228, 0
        %v294 = vsel %vm206, %v248, 0
        %v297 = vsel %vm206, %v268, 0
        %v300 = vsel %vm206, %v288, 0
        %302 = vmatpush.msra.mxu0 0.0
        %303 = vmatpush.msra.mxu0 0.0
        %304 = vmatpush.msra.mxu0 0.0
        %305 = vmatpush.msra.mxu0 0.0
        %306 = vmatpush.msra.mxu0 0.0
        %307 = vmatpush.msra.mxu0 0.0
        %308 = vmatpush.msra.mxu0 0.0
        %309 = vmatpush.msra.mxu0 0.0
        %310 = vmatpush.msra.mxu0 0.0
        %311 = vmatpush.msra.mxu0 0.0
        %312 = vmatpush.msra.mxu0 0.0
        %313 = vmatpush.msra.mxu0 0.0
        %314 = vmatpush.msra.mxu0 0.0
        %315 = vmatpush.msra.mxu0 0.0
        %316 = vmatpush.msra.mxu0 0.0
        %317 = vmatpush.msra.mxu0 %v205
        %318 = vmatmul.f32.gmra.mxu0 %v291
        %v319 = vpop.f32.mrf.mxu0
        %v320 = vadd.f32 0.0, %v319
        %321 = vmatmul.f32.gmra.mxu0 %v294
        %v322 = vpop.f32.mrf.mxu0
        %v323 = vadd.f32 0.0, %v322
        %324 = vmatmul.f32.gmra.mxu0 %v297
        %v325 = vpop.f32.mrf.mxu0
        %v326 = vadd.f32 0.0, %v325
        %327 = vmatmul.f32.gmra.mxu0 %v300
        %v328 = vpop.f32.mrf.mxu0
        %v329 = vadd.f32 0.0, %v328
        %330 = vdwg.mxu0
        %vm331 = vcmask 195584
        %v332 = vsel %vm331, %v320, inf
        %v333 = vsel %vm331, %v323, inf
        %v334 = vsel %vm331, %v326, inf
        %v335 = vsel %vm331, %v329, inf
        %v336 = vmin.f32 %v332, %v333
        %v337 = vmin.f32 %v334, %v335
        %v338 = vmin.f32 %v336, %v337
        %v339 = vmul.f32 %v320, 0.33333334
        %v340 = vmul.f32 %v320, 0.6666667
        %v341 = vadd.f32 %v339, %v340
        %v342 = vmul.f32 %v323, 0.33333334
        %v343 = vadd.f32 %v340, %v342
        %v344 = vsub.f32 %v338, %v341
        %v345 = vmul.f32 %v344, 1.442695
        %v346 = vpow.pop %v345
        %v347 = vsub.f32 %v338, %v320
        %v348 = vmul.f32 %v347, 1.442695
        %v349 = vpow.pop %v348
        %v350 = vsub.f32 %v338, %v343
        %v351 = vmul.f32 %v350, 1.442695
        %v352 = vpow.pop %v351
        %v353 = vmul.f32 %v346, 0.0
        %v354 = vadd.f32 %v353, 0.0
        %v355 = vadd.f32 %v354, %v349
        %v356 = vmul.f32 %v352, 2.0
        %v357 = vadd.f32 %v355, %v356
        %v358 = vadd.f32 %v346, %v349
        %v359 = vadd.f32 %v358, %v352
        %v360 = vadd.f32 %v359, 0.0
        %v361 = vmul.f32 %v323, 0.6666667
        %v362 = vadd.f32 %v339, %v361
        %v363 = vmul.f32 %v326, 0.33333334
        %v364 = vadd.f32 %v361, %v363
        %v365 = vsub.f32 %v338, %v362
        %v366 = vmul.f32 %v365, 1.442695
        %v367 = vpow.pop %v366
        %v368 = vsub.f32 %v338, %v323
        %v369 = vmul.f32 %v368, 1.442695
        %v370 = vpow.pop %v369
        %v371 = vsub.f32 %v338, %v364
        %v372 = vmul.f32 %v371, 1.442695
        %v373 = vpow.pop %v372
        %v374 = vmul.f32 %v367, 3.0
        %v375 = vadd.f32 %v357, %v374
        %v376 = vmul.f32 %v370, 4.0
        %v377 = vadd.f32 %v375, %v376
        %v378 = vmul.f32 %v373, 5.0
        %v379 = vadd.f32 %v377, %v378
        %v380 = vadd.f32 %v367, %v370
        %v381 = vadd.f32 %v380, %v373
        %v382 = vadd.f32 %v360, %v381
        %v383 = vmul.f32 %v326, 0.6666667
        %v384 = vadd.f32 %v342, %v383
        %v385 = vmul.f32 %v329, 0.33333334
        %v386 = vadd.f32 %v383, %v385
        %v387 = vsub.f32 %v338, %v384
        %v388 = vmul.f32 %v387, 1.442695
        %v389 = vpow.pop %v388
        %v390 = vsub.f32 %v338, %v326
        %v391 = vmul.f32 %v390, 1.442695
        %v392 = vpow.pop %v391
        %v393 = vsub.f32 %v338, %v386
        %v394 = vmul.f32 %v393, 1.442695
        %v395 = vpow.pop %v394
        %v396 = vmul.f32 %v389, 6.0
        %v397 = vadd.f32 %v379, %v396
        %v398 = vmul.f32 %v392, 7.0
        %v399 = vadd.f32 %v397, %v398
        %v400 = vmul.f32 %v395, 8.0
        %v401 = vadd.f32 %v399, %v400
        %v402 = vadd.f32 %v389, %v392
        %v403 = vadd.f32 %v402, %v395
        %v404 = vadd.f32 %v382, %v403
        %v405 = vmul.f32 %v329, 0.6666667
        %v406 = vadd.f32 %v363, %v405
        %v407 = vadd.f32 %v405, %v385
        %v408 = vsub.f32 %v338, %v406
        %v409 = vmul.f32 %v408, 1.442695
        %v410 = vpow.pop %v409
        %v411 = vsub.f32 %v338, %v329
        %v412 = vmul.f32 %v411, 1.442695
        %v413 = vpow.pop %v412
        %v414 = vsub.f32 %v338, %v407
        %v415 = vmul.f32 %v414, 1.442695
        %v416 = vpow.pop %v415
        %v417 = vmul.f32 %v410, 9.0
        %v418 = vadd.f32 %v401, %v417
        %v419 = vmul.f32 %v413, 10.0
        %v420 = vadd.f32 %v418, %v419
        %v421 = vmul.f32 %v416, 11.0
        %v422 = vadd.f32 %v420, %v421
        %v423 = vadd.f32 %v410, %v413
        %v424 = vadd.f32 %v423, %v416
        %v425 = vadd.f32 %v404, %v424
        %v426 = vrcp.pop %v425
        %v427 = vmul.f32 %v425, %v426
        %v428 = vsub.f32 1.0, %v427
        %v429 = vmul.f32 %v426, %v428
        %v430 = vadd.f32 %v426, %v429
        %vm431 = vweird.f32 %v425
        %vm432 = vweird.f32 %v426
        %vm433 = vmor %vm431, %vm432
        %v434 = vsel %vm433, %v426, %v430
        %v435 = vand.u32 2147483647, %v425
        %vm436 = vcmp.eq.f32.partialorder %v435, 8.507059e+37
        %v437 = vand.u32 %v425, 2147483648
        %v438 = vor.u32 1.1754944e-38, %v437
        %v439 = vsel %vm436, %v438, %v434
        %v440 = vmul.f32 %v422, %v439
        %441 = vst.msk [vmem:[%s190] sm:$0xff] %vm331, %v440
        %s442 = sand.u32 %s112, 1
        %s443 = scalar_lea.sflag [#allocation3], %s442
        %s444 = sand.u32 %s112, 1
        %s445 = smul.addr %s444, 8
        %s446 = scalar_lea.vmem [#allocation2], %s445
        // Predicated region
        $region33: #{leastereo_forward.5} parent=31 // pred_check
          %p447 = pneg %p122
        $region34: #{leastereo_forward.5} parent=31 // pred_check_branch
          %449 = sbr.rel (%p447) target = $region36
        $region35: #{leastereo_forward.5} parent=31 // pred_region
          %451 = vsyncadd %s443, 0
          %s452 = smul.addr %s21, 3
          %s453 = sadd.s32 %s22, %s452
          %s454 = smul.addr %s453, 8
          %s455 = scalar_lea.hbm %s3, %s454
          %s457 = sshll.u32 %s446, 4
          %s458 = int_to_ptr.vmem [resolvable:$true] %s457
          %s459 = sshll.u32 %s455, 4
          %s460 = int_to_ptr.hbm [resolvable:$true] %s459
          %462 = dma.vmem_to_hbm [thread:$0]  %s458, 128, %s460, %s443
        $region36: #{leastereo_forward.5} parent=31 // pred_fallthru
          _
      $region32: #{leastereo_forward.5} parent=5 // pred_fallthru
        _
      %p463 = scmp.le.s32.totalorder 2, %s12
      // Predicated region
      $region37: #{leastereo_forward.5} parent=5 // pred_check
        %p464 = pneg %p463
      $region38: #{leastereo_forward.5} parent=5 // pred_check_branch
        %466 = sbr.rel (%p464) target = $region40
      $region39: #{leastereo_forward.5} parent=5 // pred_region
        %s467 = ssub.s32 %s12, 2
        // Predicated region
        $region41: #{leastereo_forward.5} parent=39 // pred_check
          %p468 = pneg %p128
        $region42: #{leastereo_forward.5} parent=39 // pred_check_branch
          %470 = sbr.rel (%p468) target = $region44
        $region43: #{leastereo_forward.5} parent=39 // pred_region
          %s471 = sand.u32 %s113, 1
          %s472 = scalar_lea.sflag [#allocation3], %s471
          %s473 = sand.u32 %s113, 1
          %s474 = smul.addr %s473, 8
          %s475 = scalar_lea.vmem [#allocation2], %s474
          %477 = dma.done %s472, 128
        $region44: #{leastereo_forward.5} parent=39 // pred_fallthru
          _
      $region40: #{leastereo_forward.5} parent=5 // pred_fallthru
        _
    $region6: #{leastereo_forward.5} parent=1 // loop_footer
      %s16 = sadd.s32 1, %s12
    $region7: #{leastereo_forward.5} parent=1 // loop_footer_branch
      %11 = sbr.rel target = $region3
    $region8: #{leastereo_forward.5} parent=1 // loop_exit
      _
    %478 = vsyncpa [#allocation3], 1
    %s479 = scalar_lea.sflag [#allocation3], 1
    %480 = vsyncpa %s479, 1

</llo_original>
